<compile_context>
chip_gen: v7x
topology: tpu7x:2x2x1
jax: 0.10.0
libtpu: 0.0.40
codegen_flags: <defaults>
</compile_context>

<pallas_src>
import functools

import jax
import jax.numpy as jnp
from jax.experimental import pallas as pl
from jax.experimental.pallas import tpu as pltpu


BN_EPS = 0.8
LEAKY_SLOPE = 0.2
HIDDEN = (128, 256, 512, 1024)
FUSE_MAX_N = 2048        # fuse the head into the trunk when n_pad <= this
MAX_TILE_N = 1024        # N-tile width for the split (wide-output) head

# Packed layout of the small per-layer vectors (all stored as (1, F) f32).
# Note: b2/b3/b4 are intentionally absent (they cancel under training-mode BN).
_VEC_LAYOUT = (
    ("b1", 128),
    ("g2", 256), ("be2", 256),
    ("g3", 512), ("be3", 512),
    ("g4", 1024), ("be4", 1024),
)
_VEC_OFFSETS = {}
_off = 0
for _name, _w in _VEC_LAYOUT:
    _VEC_OFFSETS[_name] = (_off, _w)
    _off += _w
VEC_WIDTH = _off  # 3712 = 29 * 128 -> every static slice is lane-aligned


def _round_up(x, m):
    return (x + m - 1) // m * m


def _head_tile(n_pad):
    """Largest 128-multiple divisor of n_pad that is <= MAX_TILE_N."""
    best = 128
    t = 128
    while t <= min(MAX_TILE_N, n_pad):
        if n_pad % t == 0:
            best = t
        t += 128
    return best


def _vmem_limit(footprint_bytes):
    # 1.5x headroom over the estimated footprint (inputs + scratch + f32
    # intermediates); floor 32 MiB, cap 48 MiB (below v7x's 64 MiB physical).
    return int(min(max(int(1.5 * footprint_bytes) + (4 << 20), 32 << 20), 48 << 20))


def _leaky_relu(x):
    return jnp.where(x > 0, x, LEAKY_SLOPE * x)


# --------------------------------------------------------------------------
# Kernel bodies
# --------------------------------------------------------------------------
def _trunk_compute(z_ref, w1_ref, w2_ref, w3_ref, vec_ref, w4_ref, wait_w4):
    """Layers 1-4 (Linear [+BN] + LeakyReLU) on the whole batch.

    The whole batch lives in one block so the BatchNorm batch reduction is
    exact.  `wait_w4` blocks on the async w4 DMA right before the layer-4
    matmul so that DMA overlaps layers 1-3.
    NOTE: inv_b assumes the batch dimension is never padded.
    """
    inv_b = 1.0 / z_ref.shape[0]

    def vec(name):
        off, width = _VEC_OFFSETS[name]
        return vec_ref[:, off:off + width]          # (1, F) f32, lane-aligned

    def linear(x_bf16, w_ref):
        # bf16 x bf16 -> f32 accumulation on the MXU.
        return jnp.dot(x_bf16, w_ref[...], preferred_element_type=jnp.float32)

    def batchnorm(x, gamma, beta):
        # Fused training-mode BatchNorm1d: one pass for stats, single FMA apply.
        s = jnp.sum(x, axis=0, keepdims=True)
        ss = jnp.sum(x * x, axis=0, keepdims=True)
        mean = s * inv_b
        var = ss * inv_b - mean * mean               # biased variance
        scale = gamma * jax.lax.rsqrt(var + BN_EPS)
        shift = beta - mean * scale
        return x * scale + shift

    h = _leaky_relu(linear(z_ref[...], w1_ref) + vec("b1"))
    # Pre-BN biases b2/b3/b4 are omitted: they cancel exactly in batch-stat BN.
    h = _leaky_relu(batchnorm(linear(h.astype(jnp.bfloat16), w2_ref),
                              vec("g2"), vec("be2")))
    h = _leaky_relu(batchnorm(linear(h.astype(jnp.bfloat16), w3_ref),
                              vec("g3"), vec("be3")))
    wait_w4()
    h = _leaky_relu(batchnorm(linear(h.astype(jnp.bfloat16), w4_ref),
                              vec("g4"), vec("be4")))
    return h                                         # (B, 1024) f32


def _fused_kernel(z_ref, w1_ref, w2_ref, w3_ref, vec_ref, b5_ref,
                  w4_hbm, w5_hbm, out_ref, w4_buf, w5_buf, sem):
    """Whole generator in one kernel (small / medium output widths)."""
    # Kick off the two largest weight DMAs so they overlap layers 1-3 compute.
    w4_cp = pltpu.make_async_copy(w4_hbm, w4_buf, sem.at[0])
    w5_cp = pltpu.make_async_copy(w5_hbm, w5_buf, sem.at[1])
    w4_cp.start()
    w5_cp.start()

    h = _trunk_compute(z_ref, w1_ref, w2_ref, w3_ref, vec_ref, w4_buf, w4_cp.wait)

    w5_cp.wait()
    out_ref[...] = jnp.tanh(
        jnp.dot(h.astype(jnp.bfloat16), w5_buf[...],
                preferred_element_type=jnp.float32) + b5_ref[...])


def _trunk_kernel(z_ref, w1_ref, w2_ref, w3_ref, vec_ref,
                  w4_hbm, h_ref, w4_buf, sem):
    """Layers 1-4 only (wide-output path); emits h4 as bf16 for the head."""
    w4_cp = pltpu.make_async_copy(w4_hbm, w4_buf, sem.at[0])
    w4_cp.start()
    h = _trunk_compute(z_ref, w1_ref, w2_ref, w3_ref, vec_ref, w4_buf, w4_cp.wait)
    h_ref[...] = h.astype(jnp.bfloat16)


def _head_kernel(h_ref, w5_ref, b5_ref, out_ref):
    """Final Linear(1024 -> n_pad) + Tanh, tiled over N (wide-output path)."""
    out_ref[...] = jnp.tanh(
        jnp.dot(h_ref[...], w5_ref[...], preferred_element_type=jnp.float32)
        + b5_ref[...])


# --------------------------------------------------------------------------
# Parameters
# --------------------------------------------------------------------------
def init_params(key, latent_dim, img_shape):
    """Deterministic parameter init mirroring nn.Linear / nn.BatchNorm1d shapes.
    Canonical f32 params; weights stored (in, out) so the kernel does x @ W."""
    c, h, w = img_shape
    out_dim = c * h * w
    dims = [latent_dim, *HIDDEN, out_dim]
    params = {}
    keys = jax.random.split(key, 2 * (len(dims) - 1))
    for i in range(len(dims) - 1):
        fan_in, fan_out = dims[i], dims[i + 1]
        bound = 1.0 / float(fan_in) ** 0.5
        params[f"w{i+1}"] = jax.random.uniform(
            keys[2 * i], (fan_in, fan_out), jnp.float32, -bound, bound)
        params[f"b{i+1}"] = jax.random.uniform(
            keys[2 * i + 1], (1, fan_out), jnp.float32, -bound, bound)
    for i, feat in zip((2, 3, 4), (256, 512, 1024)):
        params[f"g{i}"] = jnp.ones((1, feat), jnp.float32)
        params[f"be{i}"] = jnp.zeros((1, feat), jnp.float32)
    return params


def pack_params(params, latent_dim, out_dim):
    """Pad + cast params into the layout the kernels consume (done once)."""
    latent_pad = _round_up(latent_dim, 128)
    n_pad = _round_up(out_dim, 128)
    bf = jnp.bfloat16
    packed = {
        "w1": jnp.pad(params["w1"], ((0, latent_pad - latent_dim), (0, 0))).astype(bf),
        "w2": params["w2"].astype(bf),
        "w3": params["w3"].astype(bf),
        "w4": params["w4"].astype(bf),
        "w5": jnp.pad(params["w5"], ((0, 0), (0, n_pad - out_dim))).astype(bf),
        "b5": jnp.pad(params["b5"], ((0, 0), (0, n_pad - out_dim))).astype(jnp.float32),
        # All small (1, F) vectors (b1 + BN affine) packed into one f32 buffer.
        # b2/b3/b4 are dropped: a constant pre-BN bias cancels exactly.
        "vec": jnp.concatenate(
            [params[name].astype(jnp.float32) for name, _ in _VEC_LAYOUT], axis=1),
    }
    assert packed["vec"].shape == (1, VEC_WIDTH)
    return packed


# --------------------------------------------------------------------------
# Forward
# --------------------------------------------------------------------------
@functools.partial(jax.jit, static_argnames=("img_shape",))
def generator_forward(z, packed, img_shape):
    batch = z.shape[0]
    c, h, w = img_shape
    out_dim = c * h * w

    latent_pad = packed["w1"].shape[0]
    n_pad = packed["w5"].shape[1]

    # Zero-pad latent to a lane multiple; zero rows of w1 keep the math exact.
    z_pad = jnp.pad(z, ((0, 0), (0, latent_pad - z.shape[1]))).astype(jnp.bfloat16)

    # VMEM-resident inputs (bytes) common to both paths.
    vmem_in_bytes = (z_pad.size * 2 + packed["w1"].size * 2 + packed["w2"].size * 2
                     + packed["w3"].size * 2 + packed["vec"].size * 4)
    # Live f32 intermediates in the trunk (several (B,1024) arrays + x*x temp).
    trunk_inter_bytes = batch * 5 * 1024 * 4

    if n_pad <= FUSE_MAX_N:
        # ---- Fully fused: layers 1-5 in one kernel, single grid step --------
        fused_bytes = (vmem_in_bytes + packed["b5"].size * 4
                       + packed["w4"].size * 2 + packed["w5"].size * 2   # scratch
                       + trunk_inter_bytes
                       + 3 * batch * n_pad * 4)                          # out + temps
        out_pad = pl.pallas_call(
            _fused_kernel,
            out_shape=jax.ShapeDtypeStruct((batch, n_pad), jnp.float32),
            in_specs=[pl.BlockSpec(memory_space=pltpu.MemorySpace.VMEM)] * 6
                     + [pl.BlockSpec(memory_space=pl.ANY)] * 2,          # w4, w5 in HBM
            out_specs=pl.BlockSpec(memory_space=pltpu.MemorySpace.VMEM),
            scratch_shapes=[
                pltpu.VMEM(packed["w4"].shape, jnp.bfloat16),
                pltpu.VMEM(packed["w5"].shape, jnp.bfloat16),
                pltpu.SemaphoreType.DMA((2,)),
            ],
            compiler_params=pltpu.CompilerParams(
                vmem_limit_bytes=_vmem_limit(fused_bytes)),
        )(z_pad, packed["w1"], packed["w2"], packed["w3"], packed["vec"],
          packed["b5"], packed["w4"], packed["w5"])
    else:
        # ---- Wide output: trunk kernel + N-tiled head kernel ----------------
        # TODO(synk): for very large batch, tile the trunk over B with a
        # two-pass BatchNorm (cross-grid s/ss accumulation) to bound VMEM.
        trunk_bytes = (vmem_in_bytes + packed["w4"].size * 2
                       + trunk_inter_bytes + batch * 1024 * 2)
        h4 = pl.pallas_call(
            _trunk_kernel,
            out_shape=jax.ShapeDtypeStruct((batch, 1024), jnp.bfloat16),
            in_specs=[pl.BlockSpec(memory_space=pltpu.MemorySpace.VMEM)] * 5
                     + [pl.BlockSpec(memory_space=pl.ANY)],              # w4 in HBM
            out_specs=pl.BlockSpec(memory_space=pltpu.MemorySpace.VMEM),
            scratch_shapes=[
                pltpu.VMEM(packed["w4"].shape, jnp.bfloat16),
                pltpu.SemaphoreType.DMA((1,)),
            ],
            compiler_params=pltpu.CompilerParams(
                vmem_limit_bytes=_vmem_limit(trunk_bytes)),
        )(z_pad, packed["w1"], packed["w2"], packed["w3"], packed["vec"],
          packed["w4"])

        tile_n = _head_tile(n_pad)
        head_bytes = (batch * 1024 * 2                       # resident h4
                      + 2 * (1024 * tile_n * 2               # double-buffered w5 tile
                             + tile_n * 4                    # b5 tile
                             + batch * tile_n * 4)           # output tile
                      + 2 * batch * tile_n * 4)              # f32 compute temps
        out_pad = pl.pallas_call(
            _head_kernel,
            out_shape=jax.ShapeDtypeStruct((batch, n_pad), jnp.float32),
            grid=(n_pad // tile_n,),
            in_specs=[
                pl.BlockSpec((batch, 1024), lambda j: (0, 0)),   # h4 stays resident
                pl.BlockSpec((1024, tile_n), lambda j: (0, j)),  # w5 N-tiles (pipelined)
                pl.BlockSpec((1, tile_n), lambda j: (0, j)),     # b5 N-tiles
            ],
            out_specs=pl.BlockSpec((batch, tile_n), lambda j: (0, j)),
            compiler_params=pltpu.CompilerParams(
                dimension_semantics=("parallel",),               # both TCs on v7x
                vmem_limit_bytes=_vmem_limit(head_bytes)),
        )(h4, packed["w5"], packed["b5"])

    # Drop the zero-padded output columns, reshape to NCHW like img.view(...).
    return out_pad[:, :out_dim].reshape(batch, c, h, w)


# --------------------------------------------------------------------------
# Pure-JAX reference (faithful layer ordering incl. the pre-BN biases; same
# bf16 matmul-input casts as the kernel)
# --------------------------------------------------------------------------
def reference_forward(z, params, img_shape):
    bf = jnp.bfloat16

    def linear(x, w, b):
        return jnp.dot(x.astype(bf), w.astype(bf),
                       preferred_element_type=jnp.float32) + b

    def bn(x, g, be):
        m = jnp.mean(x, axis=0, keepdims=True)
        v = jnp.mean(x * x, axis=0, keepdims=True) - m * m
        scale = g * jax.lax.rsqrt(v + BN_EPS)
        return x * scale + (be - m * scale)

    h = _leaky_relu(linear(z, params["w1"], params["b1"]))
    h = _leaky_relu(bn(linear(h, params["w2"], params["b2"]), params["g2"], params["be2"]))
    h = _leaky_relu(bn(linear(h, params["w3"], params["b3"]), params["g3"], params["be3"]))
    h = _leaky_relu(bn(linear(h, params["w4"], params["b4"]), params["g4"], params["be4"]))
    out = jnp.tanh(linear(h, params["w5"], params["b5"]))
    c, hh, ww = img_shape
    return out.reshape(z.shape[0], c, hh, ww)


def _run_case(k_params, k_z, latent_dim, img_shape, batch, tol):
    params = init_params(k_params, latent_dim, img_shape)
    out_dim = img_shape[0] * img_shape[1] * img_shape[2]
    packed = pack_params(params, latent_dim, out_dim)
    z = jax.random.normal(k_z, (batch, latent_dim), jnp.float32)

    img = generator_forward(z, packed, img_shape)
    img = jax.block_until_ready(img)

    ref = reference_forward(z, params, img_shape)
    assert img.shape == (batch,) + img_shape, img.shape
    max_err = float(jnp.max(jnp.abs(img - ref)))
    assert max_err < tol, (img_shape, max_err)


if __name__ == "__main__":
    key = jax.random.PRNGKey(0)
    k1, k2, k3, k4 = jax.random.split(key, 4)

    # Case 1: small image (out_dim=64 -> n_pad=128) -> fully fused single kernel.
    _run_case(k1, k2, latent_dim=32, img_shape=(1, 8, 8), batch=8, tol=3e-3)

    # Case 2: wide image (out_dim=3072 -> n_pad=3072 > FUSE_MAX_N) -> trunk +
    # N-tiled head path (tile_n=1024, grid=(3,), "parallel").
    _run_case(k3, k4, latent_dim=32, img_shape=(3, 32, 32), batch=8, tol=3e-3)

    print("KERNEL_OK")
</pallas_src>

<mosaic_0001>
module attributes {stable_mosaic.version = 11 : i64} {
  func.func @_fused_kernel(%arg0: memref<8x128xbf16, #tpu.memory_space<vmem>>, %arg1: memref<128x128xbf16, #tpu.memory_space<vmem>>, %arg2: memref<128x256xbf16, #tpu.memory_space<vmem>>, %arg3: memref<256x512xbf16, #tpu.memory_space<vmem>>, %arg4: memref<1x3712xf32, #tpu.memory_space<vmem>>, %arg5: memref<1x128xf32, #tpu.memory_space<vmem>>, %arg6: memref<512x1024xbf16, #tpu.memory_space<any>>, %arg7: memref<1024x128xbf16, #tpu.memory_space<any>>, %arg8: memref<8x128xf32, #tpu.memory_space<vmem>>, %arg9: memref<512x1024xbf16, #tpu.memory_space<vmem>>, %arg10: memref<1024x128xbf16, #tpu.memory_space<vmem>>, %arg11: memref<2x!tpu.dma_semaphore, #tpu.memory_space<semaphore_mem>>) attributes {dimension_semantics = [], scalar_prefetch = 0 : i64, scratch_operands = 3 : i64, tpu.core_type = #tpu.core_type<tc>} {
    %c0_i32 = arith.constant 0 : i32
    %0 = tpu.memref_slice %arg11[%c0_i32] : memref<2x!tpu.dma_semaphore, #tpu.memory_space<semaphore_mem>> -> memref<1x!tpu.dma_semaphore, #tpu.memory_space<semaphore_mem>>
    %1 = tpu.memref_squeeze %0 : memref<1x!tpu.dma_semaphore, #tpu.memory_space<semaphore_mem>> -> memref<!tpu.dma_semaphore, #tpu.memory_space<semaphore_mem>>
    tpu.enqueue_dma source(%arg6 : memref<512x1024xbf16, #tpu.memory_space<any>>) target(%arg9 : memref<512x1024xbf16, #tpu.memory_space<vmem>>) target_semaphore(%1 : memref<!tpu.dma_semaphore, #tpu.memory_space<semaphore_mem>>)
    %c1_i32 = arith.constant 1 : i32
    %2 = tpu.memref_slice %arg11[%c1_i32] : memref<2x!tpu.dma_semaphore, #tpu.memory_space<semaphore_mem>> -> memref<1x!tpu.dma_semaphore, #tpu.memory_space<semaphore_mem>>
    %3 = tpu.memref_squeeze %2 : memref<1x!tpu.dma_semaphore, #tpu.memory_space<semaphore_mem>> -> memref<!tpu.dma_semaphore, #tpu.memory_space<semaphore_mem>>
    tpu.enqueue_dma source(%arg7 : memref<1024x128xbf16, #tpu.memory_space<any>>) target(%arg10 : memref<1024x128xbf16, #tpu.memory_space<vmem>>) target_semaphore(%3 : memref<!tpu.dma_semaphore, #tpu.memory_space<semaphore_mem>>)
    %c0 = arith.constant 0 : index
    %c0_0 = arith.constant 0 : index
    %4 = vector.load %arg0[%c0, %c0_0] : memref<8x128xbf16, #tpu.memory_space<vmem>>, vector<8x128xbf16>
    %c0_1 = arith.constant 0 : index
    %c0_2 = arith.constant 0 : index
    %5 = vector.load %arg1[%c0_1, %c0_2] : memref<128x128xbf16, #tpu.memory_space<vmem>>, vector<128x128xbf16>
    %cst = arith.constant dense<0.000000e+00> : vector<8x128xf32>
    %6 = tpu.matmul %4, %5, %cst {dimension_numbers = #tpu.dot_dimension_numbers<[1], [0], [0], [1], [0, 0, 1, 1], [], []>} : vector<8x128xbf16>, vector<128x128xbf16>, vector<8x128xf32> -> vector<8x128xf32>
    %c0_3 = arith.constant 0 : index
    %c0_4 = arith.constant 0 : index
    %7 = vector.load %arg4[%c0_3, %c0_4] : memref<1x3712xf32, #tpu.memory_space<vmem>>, vector<1x128xf32>
    %8 = vector.broadcast %7 : vector<1x128xf32> to vector<8x128xf32>
    %9 = arith.addf %6, %8 : vector<8x128xf32>
    %cst_5 = arith.constant 0.000000e+00 : f32
    %10 = vector.broadcast %cst_5 : f32 to vector<8x128xf32>
    %11 = arith.cmpf ogt, %9, %10 : vector<8x128xf32>
    %cst_6 = arith.constant 2.000000e-01 : f32
    %12 = vector.broadcast %cst_6 : f32 to vector<8x128xf32>
    %13 = arith.mulf %12, %9 : vector<8x128xf32>
    %14 = arith.select %11, %9, %13 : vector<8x128xi1>, vector<8x128xf32>
    %15 = arith.truncf %14 : vector<8x128xf32> to vector<8x128xbf16>
    %c0_7 = arith.constant 0 : index
    %c0_8 = arith.constant 0 : index
    %16 = vector.load %arg2[%c0_7, %c0_8] : memref<128x256xbf16, #tpu.memory_space<vmem>>, vector<128x256xbf16>
    %cst_9 = arith.constant dense<0.000000e+00> : vector<8x256xf32>
    %17 = tpu.matmul %15, %16, %cst_9 {dimension_numbers = #tpu.dot_dimension_numbers<[1], [0], [0], [1], [0, 0, 1, 1], [], []>} : vector<8x128xbf16>, vector<128x256xbf16>, vector<8x256xf32> -> vector<8x256xf32>
    %c0_10 = arith.constant 0 : index
    %c128 = arith.constant 128 : index
    %18 = vector.load %arg4[%c0_10, %c128] : memref<1x3712xf32, #tpu.memory_space<vmem>>, vector<1x256xf32>
    %c0_11 = arith.constant 0 : index
    %c384 = arith.constant 384 : index
    %19 = vector.load %arg4[%c0_11, %c384] : memref<1x3712xf32, #tpu.memory_space<vmem>>, vector<1x256xf32>
    %cst_12 = arith.constant dense<0.000000e+00> : vector<256xf32>
    %20 = vector.multi_reduction <add>, %17, %cst_12 [0] : vector<8x256xf32> to vector<256xf32>
    %21 = vector.shape_cast %20 : vector<256xf32> to vector<1x256xf32>
    %22 = arith.mulf %17, %17 : vector<8x256xf32>
    %cst_13 = arith.constant dense<0.000000e+00> : vector<256xf32>
    %23 = vector.multi_reduction <add>, %22, %cst_13 [0] : vector<8x256xf32> to vector<256xf32>
    %24 = vector.shape_cast %23 : vector<256xf32> to vector<1x256xf32>
    %cst_14 = arith.constant 1.250000e-01 : f32
    %25 = vector.broadcast %cst_14 : f32 to vector<1x256xf32>
    %26 = arith.mulf %21, %25 : vector<1x256xf32>
    %cst_15 = arith.constant 1.250000e-01 : f32
    %27 = vector.broadcast %cst_15 : f32 to vector<1x256xf32>
    %28 = arith.mulf %24, %27 : vector<1x256xf32>
    %29 = arith.mulf %26, %26 : vector<1x256xf32>
    %30 = arith.subf %28, %29 : vector<1x256xf32>
    %cst_16 = arith.constant 8.000000e-01 : f32
    %31 = vector.broadcast %cst_16 : f32 to vector<1x256xf32>
    %32 = arith.addf %30, %31 : vector<1x256xf32>
    %33 = math.rsqrt %32 : vector<1x256xf32>
    %34 = arith.mulf %18, %33 : vector<1x256xf32>
    %35 = arith.mulf %26, %34 : vector<1x256xf32>
    %36 = arith.subf %19, %35 : vector<1x256xf32>
    %37 = vector.broadcast %34 : vector<1x256xf32> to vector<8x256xf32>
    %38 = arith.mulf %17, %37 : vector<8x256xf32>
    %39 = vector.broadcast %36 : vector<1x256xf32> to vector<8x256xf32>
    %40 = arith.addf %38, %39 : vector<8x256xf32>
    %cst_17 = arith.constant 0.000000e+00 : f32
    %41 = vector.broadcast %cst_17 : f32 to vector<8x256xf32>
    %42 = arith.cmpf ogt, %40, %41 : vector<8x256xf32>
    %cst_18 = arith.constant 2.000000e-01 : f32
    %43 = vector.broadcast %cst_18 : f32 to vector<8x256xf32>
    %44 = arith.mulf %43, %40 : vector<8x256xf32>
    %45 = arith.select %42, %40, %44 : vector<8x256xi1>, vector<8x256xf32>
    %46 = arith.truncf %45 : vector<8x256xf32> to vector<8x256xbf16>
    %c0_19 = arith.constant 0 : index
    %c0_20 = arith.constant 0 : index
    %47 = vector.load %arg3[%c0_19, %c0_20] : memref<256x512xbf16, #tpu.memory_space<vmem>>, vector<256x512xbf16>
    %cst_21 = arith.constant dense<0.000000e+00> : vector<8x512xf32>
    %48 = tpu.matmul %46, %47, %cst_21 {dimension_numbers = #tpu.dot_dimension_numbers<[1], [0], [0], [1], [0, 0, 1, 1], [], []>} : vector<8x256xbf16>, vector<256x512xbf16>, vector<8x512xf32> -> vector<8x512xf32>
    %c0_22 = arith.constant 0 : index
    %c640 = arith.constant 640 : index
    %49 = vector.load %arg4[%c0_22, %c640] : memref<1x3712xf32, #tpu.memory_space<vmem>>, vector<1x512xf32>
    %c0_23 = arith.constant 0 : index
    %c1152 = arith.constant 1152 : index
    %50 = vector.load %arg4[%c0_23, %c1152] : memref<1x3712xf32, #tpu.memory_space<vmem>>, vector<1x512xf32>
    %cst_24 = arith.constant dense<0.000000e+00> : vector<512xf32>
    %51 = vector.multi_reduction <add>, %48, %cst_24 [0] : vector<8x512xf32> to vector<512xf32>
    %52 = vector.shape_cast %51 : vector<512xf32> to vector<1x512xf32>
    %53 = arith.mulf %48, %48 : vector<8x512xf32>
    %cst_25 = arith.constant dense<0.000000e+00> : vector<512xf32>
    %54 = vector.multi_reduction <add>, %53, %cst_25 [0] : vector<8x512xf32> to vector<512xf32>
    %55 = vector.shape_cast %54 : vector<512xf32> to vector<1x512xf32>
    %cst_26 = arith.constant 1.250000e-01 : f32
    %56 = vector.broadcast %cst_26 : f32 to vector<1x512xf32>
    %57 = arith.mulf %52, %56 : vector<1x512xf32>
    %cst_27 = arith.constant 1.250000e-01 : f32
    %58 = vector.broadcast %cst_27 : f32 to vector<1x512xf32>
    %59 = arith.mulf %55, %58 : vector<1x512xf32>
    %60 = arith.mulf %57, %57 : vector<1x512xf32>
    %61 = arith.subf %59, %60 : vector<1x512xf32>
    %cst_28 = arith.constant 8.000000e-01 : f32
    %62 = vector.broadcast %cst_28 : f32 to vector<1x512xf32>
    %63 = arith.addf %61, %62 : vector<1x512xf32>
    %64 = math.rsqrt %63 : vector<1x512xf32>
    %65 = arith.mulf %49, %64 : vector<1x512xf32>
    %66 = arith.mulf %57, %65 : vector<1x512xf32>
    %67 = arith.subf %50, %66 : vector<1x512xf32>
    %68 = vector.broadcast %65 : vector<1x512xf32> to vector<8x512xf32>
    %69 = arith.mulf %48, %68 : vector<8x512xf32>
    %70 = vector.broadcast %67 : vector<1x512xf32> to vector<8x512xf32>
    %71 = arith.addf %69, %70 : vector<8x512xf32>
    %cst_29 = arith.constant 0.000000e+00 : f32
    %72 = vector.broadcast %cst_29 : f32 to vector<8x512xf32>
    %73 = arith.cmpf ogt, %71, %72 : vector<8x512xf32>
    %cst_30 = arith.constant 2.000000e-01 : f32
    %74 = vector.broadcast %cst_30 : f32 to vector<8x512xf32>
    %75 = arith.mulf %74, %71 : vector<8x512xf32>
    %76 = arith.select %73, %71, %75 : vector<8x512xi1>, vector<8x512xf32>
    %c0_i32_31 = arith.constant 0 : i32
    %77 = tpu.memref_slice %arg11[%c0_i32_31] : memref<2x!tpu.dma_semaphore, #tpu.memory_space<semaphore_mem>> -> memref<1x!tpu.dma_semaphore, #tpu.memory_space<semaphore_mem>>
    %78 = tpu.memref_squeeze %77 : memref<1x!tpu.dma_semaphore, #tpu.memory_space<semaphore_mem>> -> memref<!tpu.dma_semaphore, #tpu.memory_space<semaphore_mem>>
    tpu.wait_dma2 semaphore(%78 : memref<!tpu.dma_semaphore, #tpu.memory_space<semaphore_mem>>) src(%arg6 : memref<512x1024xbf16, #tpu.memory_space<any>>) dst(%arg9 : memref<512x1024xbf16, #tpu.memory_space<vmem>>)
    %79 = arith.truncf %76 : vector<8x512xf32> to vector<8x512xbf16>
    %c0_32 = arith.constant 0 : index
    %c0_33 = arith.constant 0 : index
    %80 = vector.load %arg9[%c0_32, %c0_33] : memref<512x1024xbf16, #tpu.memory_space<vmem>>, vector<512x1024xbf16>
    %cst_34 = arith.constant dense<0.000000e+00> : vector<8x1024xf32>
    %81 = tpu.matmul %79, %80, %cst_34 {dimension_numbers = #tpu.dot_dimension_numbers<[1], [0], [0], [1], [0, 0, 1, 1], [], []>} : vector<8x512xbf16>, vector<512x1024xbf16>, vector<8x1024xf32> -> vector<8x1024xf32>
    %c0_35 = arith.constant 0 : index
    %c1664 = arith.constant 1664 : index
    %82 = vector.load %arg4[%c0_35, %c1664] : memref<1x3712xf32, #tpu.memory_space<vmem>>, vector<1x1024xf32>
    %c0_36 = arith.constant 0 : index
    %c2688 = arith.constant 2688 : index
    %83 = vector.load %arg4[%c0_36, %c2688] : memref<1x3712xf32, #tpu.memory_space<vmem>>, vector<1x1024xf32>
    %cst_37 = arith.constant dense<0.000000e+00> : vector<1024xf32>
    %84 = vector.multi_reduction <add>, %81, %cst_37 [0] : vector<8x1024xf32> to vector<1024xf32>
    %85 = vector.shape_cast %84 : vector<1024xf32> to vector<1x1024xf32>
    %86 = arith.mulf %81, %81 : vector<8x1024xf32>
    %cst_38 = arith.constant dense<0.000000e+00> : vector<1024xf32>
    %87 = vector.multi_reduction <add>, %86, %cst_38 [0] : vector<8x1024xf32> to vector<1024xf32>
    %88 = vector.shape_cast %87 : vector<1024xf32> to vector<1x1024xf32>
    %cst_39 = arith.constant 1.250000e-01 : f32
    %89 = vector.broadcast %cst_39 : f32 to vector<1x1024xf32>
    %90 = arith.mulf %85, %89 : vector<1x1024xf32>
    %cst_40 = arith.constant 1.250000e-01 : f32
    %91 = vector.broadcast %cst_40 : f32 to vector<1x1024xf32>
    %92 = arith.mulf %88, %91 : vector<1x1024xf32>
    %93 = arith.mulf %90, %90 : vector<1x1024xf32>
    %94 = arith.subf %92, %93 : vector<1x1024xf32>
    %cst_41 = arith.constant 8.000000e-01 : f32
    %95 = vector.broadcast %cst_41 : f32 to vector<1x1024xf32>
    %96 = arith.addf %94, %95 : vector<1x1024xf32>
    %97 = math.rsqrt %96 : vector<1x1024xf32>
    %98 = arith.mulf %82, %97 : vector<1x1024xf32>
    %99 = arith.mulf %90, %98 : vector<1x1024xf32>
    %100 = arith.subf %83, %99 : vector<1x1024xf32>
    %101 = vector.broadcast %98 : vector<1x1024xf32> to vector<8x1024xf32>
    %102 = arith.mulf %81, %101 : vector<8x1024xf32>
    %103 = vector.broadcast %100 : vector<1x1024xf32> to vector<8x1024xf32>
    %104 = arith.addf %102, %103 : vector<8x1024xf32>
    %cst_42 = arith.constant 0.000000e+00 : f32
    %105 = vector.broadcast %cst_42 : f32 to vector<8x1024xf32>
    %106 = arith.cmpf ogt, %104, %105 : vector<8x1024xf32>
    %cst_43 = arith.constant 2.000000e-01 : f32
    %107 = vector.broadcast %cst_43 : f32 to vector<8x1024xf32>
    %108 = arith.mulf %107, %104 : vector<8x1024xf32>
    %109 = arith.select %106, %104, %108 : vector<8x1024xi1>, vector<8x1024xf32>
    %c1_i32_44 = arith.constant 1 : i32
    %110 = tpu.memref_slice %arg11[%c1_i32_44] : memref<2x!tpu.dma_semaphore, #tpu.memory_space<semaphore_mem>> -> memref<1x!tpu.dma_semaphore, #tpu.memory_space<semaphore_mem>>
    %111 = tpu.memref_squeeze %110 : memref<1x!tpu.dma_semaphore, #tpu.memory_space<semaphore_mem>> -> memref<!tpu.dma_semaphore, #tpu.memory_space<semaphore_mem>>
    tpu.wait_dma2 semaphore(%111 : memref<!tpu.dma_semaphore, #tpu.memory_space<semaphore_mem>>) src(%arg7 : memref<1024x128xbf16, #tpu.memory_space<any>>) dst(%arg10 : memref<1024x128xbf16, #tpu.memory_space<vmem>>)
    %112 = arith.truncf %109 : vector<8x1024xf32> to vector<8x1024xbf16>
    %c0_45 = arith.constant 0 : index
    %c0_46 = arith.constant 0 : index
    %113 = vector.load %arg10[%c0_45, %c0_46] : memref<1024x128xbf16, #tpu.memory_space<vmem>>, vector<1024x128xbf16>
    %cst_47 = arith.constant dense<0.000000e+00> : vector<8x128xf32>
    %114 = tpu.matmul %112, %113, %cst_47 {dimension_numbers = #tpu.dot_dimension_numbers<[1], [0], [0], [1], [0, 0, 1, 1], [], []>} : vector<8x1024xbf16>, vector<1024x128xbf16>, vector<8x128xf32> -> vector<8x128xf32>
    %c0_48 = arith.constant 0 : index
    %c0_49 = arith.constant 0 : index
    %115 = vector.load %arg5[%c0_48, %c0_49] : memref<1x128xf32, #tpu.memory_space<vmem>>, vector<1x128xf32>
    %116 = vector.broadcast %115 : vector<1x128xf32> to vector<8x128xf32>
    %117 = arith.addf %114, %116 : vector<8x128xf32>
    %118 = math.tanh %117 : vector<8x128xf32>
    %c0_50 = arith.constant 0 : index
    %c0_51 = arith.constant 0 : index
    %119 = vector.load %arg8[%c0_50, %c0_51] : memref<8x128xf32, #tpu.memory_space<vmem>>, vector<8x128xf32>
    tpu.vector_store %arg8[%c0_50, %c0_51], %118 {strides = array<i32>} : memref<8x128xf32, #tpu.memory_space<vmem>>, vector<8x128xf32>,
    return
  }
}

</mosaic_0001>

<llo_original>
// kernel: generator_forward.1
$region0: #{generator_forward.1}
  #allocation0 [shape = 'u32[]', space=smem, size = 0x4, offset = 0x4, fixed_abs, tag = 'smem constant byte address 0x4 - core index']
  #allocation1 [shape = 'u32[144,128]{1,0:T(1,128)}', space=vmem, size = 0x12000, scoped, tag = 'internal scratch']
  #allocation2 [shape = 'bf16[512,1024]{1,0:T(16,128)(2,1)}', space=vmem, size = 0x100000, scoped, tag = 'scratch operand']
  #allocation3 [shape = 'bf16[1024,128]{1,0:T(16,128)(2,1)}', space=vmem, size = 0x40000, scoped, tag = 'scratch operand']
  #allocation4 [shape = 's32[2]{0}', space=sflag, size = 0x8, scoped, tag = 'scratch operand']
  #allocation12 [shape = 's32[]', space=sflag, size = 0x4, offset = 0, fixed_abs, tag = 'sflag constant byte address 0x0 - dummy sync flag']
  #allocation14 [shape = 's32[]', space=sflag, size = 0x4, offset = 0, fixed_abs, tag = 'sflag constant byte address 0x0 - dummy sync flag']
  #allocation15 [shape = 's32[]', space=sflag, size = 0x4, offset = 0, fixed_abs, tag = 'sflag constant byte address 0x0 - dummy sync flag']
  #allocation16 [shape = 'u32[]', space=smem, size = 0x4, offset = 0x44, fixed_abs, tag = 'smem constant byte address 0x44 - assertion arg 0']
  #allocation17 [shape = 'u32[]', space=smem, size = 0x4, offset = 0x48, fixed_abs, tag = 'smem constant byte address 0x48 - assertion arg 1']
  %s0 = inlined_call_operand.vmem [shape: bf16[8,128], index: 0, kind: input, shape index: {}]
  %s1 = inlined_call_operand.hbm [shape: bf16[128,128], index: 1, kind: input, shape index: {}]
  %s2 = inlined_call_operand.hbm [shape: bf16[128,256], index: 2, kind: input, shape index: {}]
  %s3 = inlined_call_operand.hbm [shape: bf16[256,512], index: 3, kind: input, shape index: {}]
  %s4 = inlined_call_operand.hbm [shape: f32[1,3712], index: 4, kind: input, shape index: {}]
  %s5 = inlined_call_operand.vmem [shape: f32[1,128], index: 5, kind: input, shape index: {}]
  %s6 = inlined_call_operand.hbm [shape: bf16[512,1024], index: 6, kind: input, shape index: {}]
  %s7 = inlined_call_operand.hbm [shape: bf16[1024,128], index: 7, kind: input, shape index: {}]
  %s8 = inlined_call_operand.vmem [shape: f32[8,128], index: 8, kind: output, shape index: {}]
  %s9 = sld [smem:[#allocation0]]
  $region54: #{generator_forward.1} parent=0
    _
  %s11 = ssub.s32 1, %s9
  %s12 = scalar_select 0, %s11, %s9
  $region1: #{generator_forward.1} parent=0
    #allocation5 [shape = 'u8[32768]{0}', space=vmem, size = 0x8000, scoped, tag = 'input window, operand 1, single buffered']
    #allocation6 [shape = 's32[1]{0}', space=sflag, size = 0x4, scoped, tag = 'scoped memory for generator_forward.1']
    #allocation7 [shape = 'u8[65536]{0}', space=vmem, size = 0x10000, scoped, tag = 'input window, operand 2, single buffered']
    #allocation8 [shape = 's32[1]{0}', space=sflag, size = 0x4, scoped, tag = 'scoped memory for generator_forward.1']
    #allocation9 [shape = 'u8[262144]{0}', space=vmem, size = 0x40000, scoped, tag = 'input window, operand 3, single buffered']
    #allocation10 [shape = 'u8[14848]{0}', space=vmem, size = 0x3c00, scoped, tag = 'input window, operand 4, single buffered']
    #allocation11 [shape = 's32[1]{0}', space=sflag, size = 0x4, scoped, tag = 'scoped memory for generator_forward.1']
    #allocation13 [shape = 'u32[9]{0}', space=smem, size = 0x24, scoped, tag = 'DMA stride descriptor']
    %13 = vsyncpa [#allocation6], 0
    %14 = vsyncpa [#allocation8], 0
    %15 = vsyncpa [#allocation11], 0
    // Predicated region
    $region2: #{generator_forward.1} parent=1 // pred_check
      _
    $region3: #{generator_forward.1} parent=1 // pred_check_branch
      %17 = sbr.rel (0) target = $region5
    $region4: #{generator_forward.1} parent=1 // pred_region
      _
    $region5: #{generator_forward.1} parent=1 // pred_fallthru
      _
    // Predicated region
    $region6: #{generator_forward.1} parent=1 // pred_check
      _
    $region7: #{generator_forward.1} parent=1 // pred_check_branch
      %19 = sbr.rel (0) target = $region9
    $region8: #{generator_forward.1} parent=1 // pred_region
      %s21 = ssub.s32 1024, 1024
      %22 = vsyncadd [#allocation6], %s21
      %s23 = sshll.u32 [#allocation5], 4
      %s24 = int_to_ptr.vmem [resolvable:$true] %s23
      %29 = dma.hbm_to_vmem [thread:$0]  %s1, 1024, %s24, [#allocation6], 64, 64, 4
    $region9: #{generator_forward.1} parent=1 // pred_fallthru
      _
    // Predicated region
    $region10: #{generator_forward.1} parent=1 // pred_check
      _
    $region11: #{generator_forward.1} parent=1 // pred_check_branch
      %31 = sbr.rel (0) target = $region13
    $region12: #{generator_forward.1} parent=1 // pred_region
      %s33 = ssub.s32 2048, 2048
      %34 = vsyncadd [#allocation8], %s33
      %s35 = sshll.u32 [#allocation7], 4
      %s36 = int_to_ptr.vmem [resolvable:$true] %s35
      %41 = dma.hbm_to_vmem [thread:$0]  %s2, 2048, %s36, [#allocation8], 128, 128, 8
    $region13: #{generator_forward.1} parent=1 // pred_fallthru
      _
    // Predicated region
    $region14: #{generator_forward.1} parent=1 // pred_check
      _
    $region15: #{generator_forward.1} parent=1 // pred_check_branch
      %43 = sbr.rel (0) target = $region17
    $region16: #{generator_forward.1} parent=1 // pred_region
      %s45 = ssub.s32 8192, 8192
      %46 = vsyncadd [#allocation8], %s45
      %s47 = sshll.u32 [#allocation9], 4
      %s48 = int_to_ptr.vmem [resolvable:$true] %s47
      %53 = dma.hbm_to_vmem [thread:$0]  %s3, 8192, %s48, [#allocation8], 256, 256, 16
    $region17: #{generator_forward.1} parent=1 // pred_fallthru
      _
    // Predicated region
    $region18: #{generator_forward.1} parent=1 // pred_check
      _
    $region19: #{generator_forward.1} parent=1 // pred_check_branch
      %55 = sbr.rel (0) target = $region21
    $region20: #{generator_forward.1} parent=1 // pred_region
      %s57 = ssub.s32 464, 464
      %58 = vsyncadd [#allocation11], %s57
      %s60 = sshll.u32 [#allocation10], 4
      %s61 = int_to_ptr.vmem [resolvable:$true] %s60
      %63 = dma.hbm_to_vmem [thread:$0]  %s4, 464, %s61, [#allocation11]
    $region21: #{generator_forward.1} parent=1 // pred_fallthru
      _
    // Predicated region
    $region22: #{generator_forward.1} parent=1 // pred_check
      _
    $region23: #{generator_forward.1} parent=1 // pred_check_branch
      %65 = sbr.rel (0) target = $region25
    $region24: #{generator_forward.1} parent=1 // pred_region
      _
    $region25: #{generator_forward.1} parent=1 // pred_fallthru
      _
    // Predicated region
    $region26: #{generator_forward.1} parent=1 // pred_check
      _
    $region27: #{generator_forward.1} parent=1 // pred_check_branch
      %67 = sbr.rel (0) target = $region29
    $region28: #{generator_forward.1} parent=1 // pred_region
      %68 = dma.done [#allocation6], 1024
    $region29: #{generator_forward.1} parent=1 // pred_fallthru
      _
    // Predicated region
    $region30: #{generator_forward.1} parent=1 // pred_check
      _
    $region31: #{generator_forward.1} parent=1 // pred_check_branch
      %70 = sbr.rel (0) target = $region33
    $region32: #{generator_forward.1} parent=1 // pred_region
      %71 = dma.done [#allocation8], 2048
    $region33: #{generator_forward.1} parent=1 // pred_fallthru
      _
    // Predicated region
    $region34: #{generator_forward.1} parent=1 // pred_check
      _
    $region35: #{generator_forward.1} parent=1 // pred_check_branch
      %73 = sbr.rel (0) target = $region37
    $region36: #{generator_forward.1} parent=1 // pred_region
      %74 = dma.done [#allocation8], 8192
    $region37: #{generator_forward.1} parent=1 // pred_fallthru
      _
    // Predicated region
    $region38: #{generator_forward.1} parent=1 // pred_check
      _
    $region39: #{generator_forward.1} parent=1 // pred_check_branch
      %76 = sbr.rel (0) target = $region41
    $region40: #{generator_forward.1} parent=1 // pred_region
      %77 = dma.done [#allocation11], 464
    $region41: #{generator_forward.1} parent=1 // pred_fallthru
      _
    %s80 = sshll.u32 1, 14
    %s81 = sxor.u32 4294967295, %s80
    %s83 = sld [smem:[#allocation0]]
    %s84 = sadd.s32 2, %s83
    %s86 = sshll.u32 7, 26
    %s87 = sxor.u32 4294967295, %s86
    %s88 = sand.u32 0, %s87
    %s89 = sshll.u32 %s84, 26
    %s90 = sor.u32 %s88, %s89
    %s91 = sshll.u32 [#allocation2], 4
    %s92 = int_to_ptr.vmem [resolvable:$true] %s91
    %95 = sst [smem:[#allocation13]] 1024
    %s96 = scalar_lea.smem [#allocation13], 1
    %97 = sst [smem:[%s96]] 1024
    %s98 = scalar_lea.smem [#allocation13], 2
    %99 = sst [smem:[%s98]] 8
    %s100 = scalar_lea.smem [#allocation13], 3
    %101 = sst [smem:[%s100]] 64
    %s102 = scalar_lea.smem [#allocation13], 4
    %103 = sst [smem:[%s102]] 128
    %s104 = scalar_lea.smem [#allocation13], 5
    %105 = sst [smem:[%s104]] 2
    %s106 = scalar_lea.smem [#allocation13], 6
    %107 = sst [smem:[%s106]] 512
    %s108 = scalar_lea.smem [#allocation13], 7
    %109 = sst [smem:[%s108]] 64
    %s110 = scalar_lea.smem [#allocation13], 8
    %111 = sst [smem:[%s110]] 4
    %113 = dma.general %s6, 32768, %s92, [#allocation4], [#allocation12], [#allocation13], %s90, 0
    %s114 = scalar_lea.sflag [#allocation4], 1
    // Predicated region
    $region42: #{generator_forward.1} parent=1 // pred_check
      _
    $region43: #{generator_forward.1} parent=1 // pred_check_branch
      %116 = sbr.rel target = $region45
    $region44: #{generator_forward.1} parent=1 // pred_region
      %117 = sst [smem:[#allocation16]] [#allocation15]
      %118 = sst [smem:[#allocation17]] [#allocation14]
    $region45: #{generator_forward.1} parent=1 // pred_fallthru
      _
    %120 = shalt.err (0)
    %s122 = sshll.u32 [#allocation3], 4
    %s123 = int_to_ptr.vmem [resolvable:$true] %s122
    %125 = dma.hbm_to_vmem [thread:$0]  %s7, 8192, %s123, %s114
    %v126 = vld [vmem:[%s0] sm:$0xf]
    %v127 = vld [vmem:[#allocation5] sm:$0xf]
    %v128 = vld [vmem:[#allocation5 + $0x4] sm:$0xf]
    %v129 = vld [vmem:[#allocation5 + $0x8] sm:$0xf]
    %v130 = vld [vmem:[#allocation5 + $0xc] sm:$0xf]
    %v131 = vld [vmem:[#allocation5 + $0x10] sm:$0xf]
    %v132 = vld [vmem:[#allocation5 + $0x14] sm:$0xf]
    %v133 = vld [vmem:[#allocation5 + $0x18] sm:$0xf]
    %v134 = vld [vmem:[#allocation5 + $0x1c] sm:$0xf]
    %v135 = vld [vmem:[#allocation5 + $0x20] sm:$0xf]
    %v136 = vld [vmem:[#allocation5 + $0x24] sm:$0xf]
    %v137 = vld [vmem:[#allocation5 + $0x28] sm:$0xf]
    %v138 = vld [vmem:[#allocation5 + $0x2c] sm:$0xf]
    %v139 = vld [vmem:[#allocation5 + $0x30] sm:$0xf]
    %v140 = vld [vmem:[#allocation5 + $0x34] sm:$0xf]
    %v141 = vld [vmem:[#allocation5 + $0x38] sm:$0xf]
    %v142 = vld [vmem:[#allocation5 + $0x3c] sm:$0xf]
    %v143 = vld [vmem:[#allocation10] sm:$0x1]
    %v145 = vlaneseq
    %v146 = vshrl.u32 %v145, 7
    %v147 = vsub.s32 0, %v146
    %v148 = vrot.slane %v143, %v147
    %v166 = vunpack.c.l.b16 %v127
    %v167 = vunpack.c.l.b16 %v128
    %v168 = vunpack.c.l.b16 %v129
    %v169 = vunpack.c.l.b16 %v130
    %v170 = vunpack.c.l.b16 %v131
    %v171 = vunpack.c.l.b16 %v132
    %v172 = vunpack.c.l.b16 %v133
    %v173 = vunpack.c.l.b16 %v134
    %v174 = vunpack.c.l.b16 %v135
    %v175 = vunpack.c.l.b16 %v136
    %v176 = vunpack.c.l.b16 %v137
    %v177 = vunpack.c.l.b16 %v138
    %v178 = vunpack.c.l.b16 %v139
    %v179 = vunpack.c.l.b16 %v140
    %v180 = vunpack.c.l.b16 %v141
    %v181 = vunpack.c.l.b16 %v142
    %v182 = vpack.c.b16 %v167, %v166
    %v183 = vpack.c.b16 %v169, %v168
    %v184 = vpack.c.b16 %v171, %v170
    %v185 = vpack.c.b16 %v173, %v172
    %v186 = vpack.c.b16 %v175, %v174
    %v187 = vpack.c.b16 %v177, %v176
    %v188 = vpack.c.b16 %v179, %v178
    %v189 = vpack.c.b16 %v181, %v180
    %198 = vmatprep.subr.bf16.mxu0 0
    %199 = vmatpush1.bf16.msra.mxu0 %v182
    %200 = vmatprep.subr.bf16.mxu0 0
    %201 = vmatpush1.bf16.msra.mxu0 %v183
    %202 = vmatprep.subr.bf16.mxu0 0
    %203 = vmatpush1.bf16.msra.mxu0 %v184
    %204 = vmatprep.subr.bf16.mxu0 0
    %205 = vmatpush1.bf16.msra.mxu0 %v185
    %206 = vmatprep.subr.bf16.mxu0 0
    %207 = vmatpush1.bf16.msra.mxu0 %v186
    %208 = vmatprep.subr.bf16.mxu0 0
    %209 = vmatpush1.bf16.msra.mxu0 %v187
    %210 = vmatprep.subr.bf16.mxu0 0
    %211 = vmatpush1.bf16.msra.mxu0 %v188
    %212 = vmatprep.subr.bf16.mxu0 0
    %213 = vmatpush1.bf16.msra.mxu0 %v189
    %214 = vmatprep.subr.bf16.mxu0 0
    %215 = vmatpush1.bf16.msra.mxu0 0
    %216 = vmatprep.subr.bf16.mxu0 0
    %217 = vmatpush1.bf16.msra.mxu0 0
    %218 = vmatprep.subr.bf16.mxu0 0
    %219 = vmatpush1.bf16.msra.mxu0 0
    %220 = vmatprep.subr.bf16.mxu0 0
    %221 = vmatpush1.bf16.msra.mxu0 0
    %222 = vmatprep.subr.bf16.mxu0 0
    %223 = vmatpush1.bf16.msra.mxu0 0
    %224 = vmatprep.subr.bf16.mxu0 0
    %225 = vmatpush1.bf16.msra.mxu0 0
    %226 = vmatprep.subr.bf16.mxu0 0
    %227 = vmatpush1.bf16.msra.mxu0 0
    %228 = vmatprep.subr.bf16.mxu0 0
    %229 = vmatpush1.bf16.msra.mxu0 0
    %230 = vmatprep.mubr.bf16.mxu0 0
    %231 = vmatmul.mubr.bf16.gmra.mrb[0].mxu0 %v126
    %v232 = vpop.f32.mrb[0].mxu0
    %v233 = vadd.f32 %v148, %v232
    %v234 = vpop.f32.mrb[0].mxu0
    %v235 = vpop.f32.mrb[0].mxu0
    %v236 = vpop.f32.mrb[0].mxu0
    %237 = vdwg.mxu0
    %vm238 = vcmp.gt.f32.partialorder %v233, 0.0
    %v239 = vmul.f32 %v233, 0.2
    %v240 = vsel %vm238, %v233, %v239
    %v241 = vpack.c.bf16 %v240, %v240
    %v242 = vld [vmem:[#allocation7] sm:$0xff]
    %v243 = vld [vmem:[#allocation7 + $0x8] sm:$0xff]
    %v244 = vld [vmem:[#allocation7 + $0x10] sm:$0xff]
    %v245 = vld [vmem:[#allocation7 + $0x18] sm:$0xff]
    %v246 = vld [vmem:[#allocation7 + $0x20] sm:$0xff]
    %v247 = vld [vmem:[#allocation7 + $0x28] sm:$0xff]
    %v248 = vld [vmem:[#allocation7 + $0x30] sm:$0xff]
    %v249 = vld [vmem:[#allocation7 + $0x38] sm:$0xff]
    %v250 = vld [vmem:[#allocation7 + $0x40] sm:$0xff]
    %v251 = vld [vmem:[#allocation7 + $0x48] sm:$0xff]
    %v252 = vld [vmem:[#allocation7 + $0x50] sm:$0xff]
    %v253 = vld [vmem:[#allocation7 + $0x58] sm:$0xff]
    %v254 = vld [vmem:[#allocation7 + $0x60] sm:$0xff]
    %v255 = vld [vmem:[#allocation7 + $0x68] sm:$0xff]
    %v256 = vld [vmem:[#allocation7 + $0x70] sm:$0xff]
    %v257 = vld [vmem:[#allocation7 + $0x78] sm:$0xff]
    %v274 = vunpack.c.l.b16 %v242
    %v275 = vunpack.c.h.b16 %v242
    %v276 = vunpack.c.l.b16 %v243
    %v277 = vunpack.c.h.b16 %v243
    %v278 = vunpack.c.l.b16 %v244
    %v279 = vunpack.c.h.b16 %v244
    %v280 = vunpack.c.l.b16 %v245
    %v281 = vunpack.c.h.b16 %v245
    %v282 = vunpack.c.l.b16 %v246
    %v283 = vunpack.c.h.b16 %v246
    %v284 = vunpack.c.l.b16 %v247
    %v285 = vunpack.c.h.b16 %v247
    %v286 = vunpack.c.l.b16 %v248
    %v287 = vunpack.c.h.b16 %v248
    %v288 = vunpack.c.l.b16 %v249
    %v289 = vunpack.c.h.b16 %v249
    %v290 = vunpack.c.l.b16 %v250
    %v291 = vunpack.c.h.b16 %v250
    %v292 = vunpack.c.l.b16 %v251
    %v293 = vunpack.c.h.b16 %v251
    %v294 = vunpack.c.l.b16 %v252
    %v295 = vunpack.c.h.b16 %v252
    %v296 = vunpack.c.l.b16 %v253
    %v297 = vunpack.c.h.b16 %v253
    %v298 = vunpack.c.l.b16 %v254
    %v299 = vunpack.c.h.b16 %v254
    %v300 = vunpack.c.l.b16 %v255
    %v301 = vunpack.c.h.b16 %v255
    %v302 = vunpack.c.l.b16 %v256
    %v303 = vunpack.c.h.b16 %v256
    %v304 = vunpack.c.l.b16 %v257
    %v305 = vunpack.c.h.b16 %v257
    %v306 = vpack.c.b16 %v276, %v274
    %v307 = vpack.c.b16 %v277, %v275
    %v308 = vpack.c.b16 %v280, %v278
    %v309 = vpack.c.b16 %v281, %v279
    %v310 = vpack.c.b16 %v284, %v282
    %v311 = vpack.c.b16 %v285, %v283
    %v312 = vpack.c.b16 %v288, %v286
    %v313 = vpack.c.b16 %v289, %v287
    %v314 = vpack.c.b16 %v292, %v290
    %v315 = vpack.c.b16 %v293, %v291
    %v316 = vpack.c.b16 %v296, %v294
    %v317 = vpack.c.b16 %v297, %v295
    %v318 = vpack.c.b16 %v300, %v298
    %v319 = vpack.c.b16 %v301, %v299
    %v320 = vpack.c.b16 %v304, %v302
    %v321 = vpack.c.b16 %v305, %v303
    %338 = vmatprep.subr.bf16.mxu0 %v307
    %339 = vmatpush1.bf16.msra.mxu0 %v306
    %340 = vmatprep.subr.bf16.mxu0 %v309
    %341 = vmatpush1.bf16.msra.mxu0 %v308
    %342 = vmatprep.subr.bf16.mxu0 %v311
    %343 = vmatpush1.bf16.msra.mxu0 %v310
    %344 = vmatprep.subr.bf16.mxu0 %v313
    %345 = vmatpush1.bf16.msra.mxu0 %v312
    %346 = vmatprep.subr.bf16.mxu0 %v315
    %347 = vmatpush1.bf16.msra.mxu0 %v314
    %348 = vmatprep.subr.bf16.mxu0 %v317
    %349 = vmatpush1.bf16.msra.mxu0 %v316
    %350 = vmatprep.subr.bf16.mxu0 %v319
    %351 = vmatpush1.bf16.msra.mxu0 %v318
    %352 = vmatprep.subr.bf16.mxu0 %v321
    %353 = vmatpush1.bf16.msra.mxu0 %v320
    %354 = vmatprep.subr.bf16.mxu0 0
    %355 = vmatpush1.bf16.msra.mxu0 0
    %356 = vmatprep.subr.bf16.mxu0 0
    %357 = vmatpush1.bf16.msra.mxu0 0
    %358 = vmatprep.subr.bf16.mxu0 0
    %359 = vmatpush1.bf16.msra.mxu0 0
    %360 = vmatprep.subr.bf16.mxu0 0
    %361 = vmatpush1.bf16.msra.mxu0 0
    %362 = vmatprep.subr.bf16.mxu0 0
    %363 = vmatpush1.bf16.msra.mxu0 0
    %364 = vmatprep.subr.bf16.mxu0 0
    %365 = vmatpush1.bf16.msra.mxu0 0
    %366 = vmatprep.subr.bf16.mxu0 0
    %367 = vmatpush1.bf16.msra.mxu0 0
    %368 = vmatprep.subr.bf16.mxu0 0
    %369 = vmatpush1.bf16.msra.mxu0 0
    %370 = vmatprep.mubr.bf16.mxu0 0
    %371 = vmatmul.mubr.bf16.gmra.mrb[0].mxu0 %v241
    %v372 = vpop.f32.mrb[0].mxu0
    %v373 = vadd.f32 0.0, %v372
    %v374 = vpop.f32.mrb[0].mxu0
    %v375 = vadd.f32 0.0, %v374
    %v376 = vpop.f32.mrb[0].mxu0
    %v377 = vpop.f32.mrb[0].mxu0
    %378 = vdwg.mxu0
    %v379 = vld [vmem:[#allocation10 + $0x1] sm:$0x3]
    %v380 = vld [vmem:[#allocation10 + $0x3] sm:$0x3]
    %v381 = vrot.slane %v373, 4
    %v382 = vadd.f32 %v373, %v381
    %v383 = vrot.slane %v382, 2
    %v384 = vadd.f32 %v382, %v383
    %v385 = vrot.slane %v384, 1
    %v386 = vadd.f32 %v384, %v385
    %v387 = vrot.slane %v375, 4
    %v388 = vadd.f32 %v375, %v387
    %v389 = vrot.slane %v388, 2
    %v390 = vadd.f32 %v388, %v389
    %v391 = vrot.slane %v390, 1
    %v392 = vadd.f32 %v390, %v391
    %v393 = vmul.f32 %v373, %v373
    %v394 = vmul.f32 %v375, %v375
    %v395 = vrot.slane %v393, 4
    %v396 = vadd.f32 %v393, %v395
    %v397 = vrot.slane %v396, 2
    %v398 = vadd.f32 %v396, %v397
    %v399 = vrot.slane %v398, 1
    %v400 = vadd.f32 %v398, %v399
    %v401 = vrot.slane %v394, 4
    %v402 = vadd.f32 %v394, %v401
    %v403 = vrot.slane %v402, 2
    %v404 = vadd.f32 %v402, %v403
    %v405 = vrot.slane %v404, 1
    %v406 = vadd.f32 %v404, %v405
    %v407 = vmul.f32 %v386, 0.125
    %v408 = vmul.f32 %v392, 0.125
    %v409 = vmul.f32 %v400, 0.125
    %v410 = vmul.f32 %v406, 0.125
    %v411 = vmul.f32 %v407, %v407
    %v412 = vmul.f32 %v408, %v408
    %v413 = vsub.f32 %v409, %v411
    %v414 = vsub.f32 %v410, %v412
    %v415 = vadd.f32 %v413, 0.8
    %v416 = vadd.f32 %v414, 0.8
    %v417 = vrsqrt.pop %v415
    %v418 = vrsqrt.pop %v416
    %v421 = vcombine.low %v417, %v418
    %v423 = vunpack.c.l.s4 1966171168
    %v424 = vunpack.c.0.s8 %v423
    %v425 = vlaneseq
    %v426 = vshrl.u32 %v425, 7
    %v427 = vsub.s32 %v424, %v426
    %v428 = vrot.slane %v421, %v427
    %v430 = vunpack.c.l.s4 1966171168
    %v431 = vunpack.c.0.s8 %v430
    %v432 = vlaneseq
    %v433 = vshrl.u32 %v432, 7
    %v434 = vsub.s32 %v431, %v433
    %v435 = vrot.slane %v428, %v434
    %v437 = vmul.f32 %v379, %v435
    %v439 = vlaneseq
    %v440 = vshrl.u32 %v439, 7
    %v441 = vsub.s32 0, %v440
    %v442 = vrot.slane %v437, %v441
    %v443 = vlaneseq
    %v444 = vshrl.u32 %v443, 7
    %v445 = vsub.s32 1, %v444
    %v446 = vrot.slane %v437, %v445
    %v449 = vmul.f32 %v407, %v442
    %v450 = vmul.f32 %v408, %v446
    %v453 = vcombine.low %v449, %v450
    %v455 = vunpack.c.l.s4 1966171168
    %v456 = vunpack.c.0.s8 %v455
    %v457 = vlaneseq
    %v458 = vshrl.u32 %v457, 7
    %v459 = vsub.s32 %v456, %v458
    %v460 = vrot.slane %v453, %v459
    %v462 = vunpack.c.l.s4 1966171168
    %v463 = vunpack.c.0.s8 %v462
    %v464 = vlaneseq
    %v465 = vshrl.u32 %v464, 7
    %v466 = vsub.s32 %v463, %v465
    %v467 = vrot.slane %v460, %v466
    %v469 = vsub.f32 %v380, %v467
    %v470 = vmul.f32 %v373, %v442
    %v471 = vmul.f32 %v375, %v446
    %v473 = vlaneseq
    %v474 = vshrl.u32 %v473, 7
    %v475 = vsub.s32 0, %v474
    %v476 = vrot.slane %v469, %v475
    %v477 = vlaneseq
    %v478 = vshrl.u32 %v477, 7
    %v479 = vsub.s32 1, %v478
    %v480 = vrot.slane %v469, %v479
    %v483 = vadd.f32 %v470, %v476
    %v484 = vadd.f32 %v471, %v480
    %vm485 = vcmp.gt.f32.partialorder %v483, 0.0
    %vm486 = vcmp.gt.f32.partialorder %v484, 0.0
    %v487 = vmul.f32 %v483, 0.2
    %v488 = vmul.f32 %v484, 0.2
    %v489 = vsel %vm485, %v483, %v487
    %v490 = vsel %vm486, %v484, %v488
    %v491 = vpack.c.bf16 %v489, %v489
    %v492 = vpack.c.bf16 %v490, %v490
    %v493 = vld [vmem:[#allocation9] sm:$0xff]
    %v494 = vld [vmem:[#allocation9 + $0x8] sm:$0xff]
    %v495 = vld [vmem:[#allocation9 + $0x10] sm:$0xff]
    %v496 = vld [vmem:[#allocation9 + $0x18] sm:$0xff]
    %v497 = vld [vmem:[#allocation9 + $0x20] sm:$0xff]
    %v498 = vld [vmem:[#allocation9 + $0x28] sm:$0xff]
    %v499 = vld [vmem:[#allocation9 + $0x30] sm:$0xff]
    %v500 = vld [vmem:[#allocation9 + $0x38] sm:$0xff]
    %v501 = vld [vmem:[#allocation9 + $0x40] sm:$0xff]
    %v502 = vld [vmem:[#allocation9 + $0x48] sm:$0xff]
    %v503 = vld [vmem:[#allocation9 + $0x50] sm:$0xff]
    %v504 = vld [vmem:[#allocation9 + $0x58] sm:$0xff]
    %v505 = vld [vmem:[#allocation9 + $0x60] sm:$0xff]
    %v506 = vld [vmem:[#allocation9 + $0x68] sm:$0xff]
    %v507 = vld [vmem:[#allocation9 + $0x70] sm:$0xff]
    %v508 = vld [vmem:[#allocation9 + $0x78] sm:$0xff]
    %v509 = vld [vmem:[#allocation9 + $0x80] sm:$0xff]
    %v510 = vld [vmem:[#allocation9 + $0x88] sm:$0xff]
    %v511 = vld [vmem:[#allocation9 + $0x90] sm:$0xff]
    %v512 = vld [vmem:[#allocation9 + $0x98] sm:$0xff]
    %v513 = vld [vmem:[#allocation9 + $0xa0] sm:$0xff]
    %v514 = vld [vmem:[#allocation9 + $0xa8] sm:$0xff]
    %v515 = vld [vmem:[#allocation9 + $0xb0] sm:$0xff]
    %v516 = vld [vmem:[#allocation9 + $0xb8] sm:$0xff]
    %v517 = vld [vmem:[#allocation9 + $0xc0] sm:$0xff]
    %v518 = vld [vmem:[#allocation9 + $0xc8] sm:$0xff]
    %v519 = vld [vmem:[#allocation9 + $0xd0] sm:$0xff]
    %v520 = vld [vmem:[#allocation9 + $0xd8] sm:$0xff]
    %v521 = vld [vmem:[#allocation9 + $0xe0] sm:$0xff]
    %v522 = vld [vmem:[#allocation9 + $0xe8] sm:$0xff]
    %v523 = vld [vmem:[#allocation9 + $0xf0] sm:$0xff]
    %v524 = vld [vmem:[#allocation9 + $0xf8] sm:$0xff]
    %v525 = vld [vmem:[#allocation9 + $0x100] sm:$0xff]
    %v526 = vld [vmem:[#allocation9 + $0x108] sm:$0xff]
    %v527 = vld [vmem:[#allocation9 + $0x110] sm:$0xff]
    %v528 = vld [vmem:[#allocation9 + $0x118] sm:$0xff]
    %v529 = vld [vmem:[#allocation9 + $0x120] sm:$0xff]
    %v530 = vld [vmem:[#allocation9 + $0x128] sm:$0xff]
    %v531 = vld [vmem:[#allocation9 + $0x130] sm:$0xff]
    %v532 = vld [vmem:[#allocation9 + $0x138] sm:$0xff]
    %v533 = vld [vmem:[#allocation9 + $0x140] sm:$0xff]
    %v534 = vld [vmem:[#allocation9 + $0x148] sm:$0xff]
    %v535 = vld [vmem:[#allocation9 + $0x150] sm:$0xff]
    %v536 = vld [vmem:[#allocation9 + $0x158] sm:$0xff]
    %v537 = vld [vmem:[#allocation9 + $0x160] sm:$0xff]
    %v538 = vld [vmem:[#allocation9 + $0x168] sm:$0xff]
    %v539 = vld [vmem:[#allocation9 + $0x170] sm:$0xff]
    %v540 = vld [vmem:[#allocation9 + $0x178] sm:$0xff]
    %v541 = vld [vmem:[#allocation9 + $0x180] sm:$0xff]
    %v542 = vld [vmem:[#allocation9 + $0x188] sm:$0xff]
    %v543 = vld [vmem:[#allocation9 + $0x190] sm:$0xff]
    %v544 = vld [vmem:[#allocation9 + $0x198] sm:$0xff]
    %v545 = vld [vmem:[#allocation9 + $0x1a0] sm:$0xff]
    %v546 = vld [vmem:[#allocation9 + $0x1a8] sm:$0xff]
    %v547 = vld [vmem:[#allocation9 + $0x1b0] sm:$0xff]
    %v548 = vld [vmem:[#allocation9 + $0x1b8] sm:$0xff]
    %v549 = vld [vmem:[#allocation9 + $0x1c0] sm:$0xff]
    %v550 = vld [vmem:[#allocation9 + $0x1c8] sm:$0xff]
    %v551 = vld [vmem:[#allocation9 + $0x1d0] sm:$0xff]
    %v552 = vld [vmem:[#allocation9 + $0x1d8] sm:$0xff]
    %v553 = vld [vmem:[#allocation9 + $0x1e0] sm:$0xff]
    %v554 = vld [vmem:[#allocation9 + $0x1e8] sm:$0xff]
    %v555 = vld [vmem:[#allocation9 + $0x1f0] sm:$0xff]
    %v556 = vld [vmem:[#allocation9 + $0x1f8] sm:$0xff]
    %v621 = vunpack.c.l.b16 %v493
    %v622 = vunpack.c.h.b16 %v493
    %v623 = vunpack.c.l.b16 %v494
    %v624 = vunpack.c.h.b16 %v494
    %v625 = vunpack.c.l.b16 %v495
    %v626 = vunpack.c.h.b16 %v495
    %v627 = vunpack.c.l.b16 %v496
    %v628 = vunpack.c.h.b16 %v496
    %v629 = vunpack.c.l.b16 %v497
    %v630 = vunpack.c.h.b16 %v497
    %v631 = vunpack.c.l.b16 %v498
    %v632 = vunpack.c.h.b16 %v498
    %v633 = vunpack.c.l.b16 %v499
    %v634 = vunpack.c.h.b16 %v499
    %v635 = vunpack.c.l.b16 %v500
    %v636 = vunpack.c.h.b16 %v500
    %v637 = vunpack.c.l.b16 %v501
    %v638 = vunpack.c.h.b16 %v501
    %v639 = vunpack.c.l.b16 %v502
    %v640 = vunpack.c.h.b16 %v502
    %v641 = vunpack.c.l.b16 %v503
    %v642 = vunpack.c.h.b16 %v503
    %v643 = vunpack.c.l.b16 %v504
    %v644 = vunpack.c.h.b16 %v504
    %v645 = vunpack.c.l.b16 %v505
    %v646 = vunpack.c.h.b16 %v505
    %v647 = vunpack.c.l.b16 %v506
    %v648 = vunpack.c.h.b16 %v506
    %v649 = vunpack.c.l.b16 %v507
    %v650 = vunpack.c.h.b16 %v507
    %v651 = vunpack.c.l.b16 %v508
    %v652 = vunpack.c.h.b16 %v508
    %v653 = vunpack.c.l.b16 %v509
    %v654 = vunpack.c.h.b16 %v509
    %v655 = vunpack.c.l.b16 %v510
    %v656 = vunpack.c.h.b16 %v510
    %v657 = vunpack.c.l.b16 %v511
    %v658 = vunpack.c.h.b16 %v511
    %v659 = vunpack.c.l.b16 %v512
    %v660 = vunpack.c.h.b16 %v512
    %v661 = vunpack.c.l.b16 %v513
    %v662 = vunpack.c.h.b16 %v513
    %v663 = vunpack.c.l.b16 %v514
    %v664 = vunpack.c.h.b16 %v514
    %v665 = vunpack.c.l.b16 %v515
    %v666 = vunpack.c.h.b16 %v515
    %v667 = vunpack.c.l.b16 %v516
    %v668 = vunpack.c.h.b16 %v516
    %v669 = vunpack.c.l.b16 %v517
    %v670 = vunpack.c.h.b16 %v517
    %v671 = vunpack.c.l.b16 %v518
    %v672 = vunpack.c.h.b16 %v518
    %v673 = vunpack.c.l.b16 %v519
    %v674 = vunpack.c.h.b16 %v519
    %v675 = vunpack.c.l.b16 %v520
    %v676 = vunpack.c.h.b16 %v520
    %v677 = vunpack.c.l.b16 %v521
    %v678 = vunpack.c.h.b16 %v521
    %v679 = vunpack.c.l.b16 %v522
    %v680 = vunpack.c.h.b16 %v522
    %v681 = vunpack.c.l.b16 %v523
    %v682 = vunpack.c.h.b16 %v523
    %v683 = vunpack.c.l.b16 %v524
    %v684 = vunpack.c.h.b16 %v524
    %v685 = vunpack.c.l.b16 %v525
    %v686 = vunpack.c.h.b16 %v525
    %v687 = vunpack.c.l.b16 %v526
    %v688 = vunpack.c.h.b16 %v526
    %v689 = vunpack.c.l.b16 %v527
    %v690 = vunpack.c.h.b16 %v527
    %v691 = vunpack.c.l.b16 %v528
    %v692 = vunpack.c.h.b16 %v528
    %v693 = vunpack.c.l.b16 %v529
    %v694 = vunpack.c.h.b16 %v529
    %v695 = vunpack.c.l.b16 %v530
    %v696 = vunpack.c.h.b16 %v530
    %v697 = vunpack.c.l.b16 %v531
    %v698 = vunpack.c.h.b16 %v531
    %v699 = vunpack.c.l.b16 %v532
    %v700 = vunpack.c.h.b16 %v532
    %v701 = vunpack.c.l.b16 %v533
    %v702 = vunpack.c.h.b16 %v533
    %v703 = vunpack.c.l.b16 %v534
    %v704 = vunpack.c.h.b16 %v534
    %v705 = vunpack.c.l.b16 %v535
    %v706 = vunpack.c.h.b16 %v535
    %v707 = vunpack.c.l.b16 %v536
    %v708 = vunpack.c.h.b16 %v536
    %v709 = vunpack.c.l.b16 %v537
    %v710 = vunpack.c.h.b16 %v537
    %v711 = vunpack.c.l.b16 %v538
    %v712 = vunpack.c.h.b16 %v538
    %v713 = vunpack.c.l.b16 %v539
    %v714 = vunpack.c.h.b16 %v539
    %v715 = vunpack.c.l.b16 %v540
    %v716 = vunpack.c.h.b16 %v540
    %v717 = vunpack.c.l.b16 %v541
    %v718 = vunpack.c.h.b16 %v541
    %v719 = vunpack.c.l.b16 %v542
    %v720 = vunpack.c.h.b16 %v542
    %v721 = vunpack.c.l.b16 %v543
    %v722 = vunpack.c.h.b16 %v543
    %v723 = vunpack.c.l.b16 %v544
    %v724 = vunpack.c.h.b16 %v544
    %v725 = vunpack.c.l.b16 %v545
    %v726 = vunpack.c.h.b16 %v545
    %v727 = vunpack.c.l.b16 %v546
    %v728 = vunpack.c.h.b16 %v546
    %v729 = vunpack.c.l.b16 %v547
    %v730 = vunpack.c.h.b16 %v547
    %v731 = vunpack.c.l.b16 %v548
    %v732 = vunpack.c.h.b16 %v548
    %v733 = vunpack.c.l.b16 %v549
    %v734 = vunpack.c.h.b16 %v549
    %v735 = vunpack.c.l.b16 %v550
    %v736 = vunpack.c.h.b16 %v550
    %v737 = vunpack.c.l.b16 %v551
    %v738 = vunpack.c.h.b16 %v551
    %v739 = vunpack.c.l.b16 %v552
    %v740 = vunpack.c.h.b16 %v552
    %v741 = vunpack.c.l.b16 %v553
    %v742 = vunpack.c.h.b16 %v553
    %v743 = vunpack.c.l.b16 %v554
    %v744 = vunpack.c.h.b16 %v554
    %v745 = vunpack.c.l.b16 %v555
    %v746 = vunpack.c.h.b16 %v555
    %v747 = vunpack.c.l.b16 %v556
    %v748 = vunpack.c.h.b16 %v556
    %v749 = vpack.c.b16 %v625, %v621
    %v750 = vpack.c.b16 %v626, %v622
    %v751 = vpack.c.b16 %v627, %v623
    %v752 = vpack.c.b16 %v628, %v624
    %v753 = vpack.c.b16 %v633, %v629
    %v754 = vpack.c.b16 %v634, %v630
    %v755 = vpack.c.b16 %v635, %v631
    %v756 = vpack.c.b16 %v636, %v632
    %v757 = vpack.c.b16 %v641, %v637
    %v758 = vpack.c.b16 %v642, %v638
    %v759 = vpack.c.b16 %v643, %v639
    %v760 = vpack.c.b16 %v644, %v640
    %v761 = vpack.c.b16 %v649, %v645
    %v762 = vpack.c.b16 %v650, %v646
    %v763 = vpack.c.b16 %v651, %v647
    %v764 = vpack.c.b16 %v652, %v648
    %v765 = vpack.c.b16 %v657, %v653
    %v766 = vpack.c.b16 %v658, %v654
    %v767 = vpack.c.b16 %v659, %v655
    %v768 = vpack.c.b16 %v660, %v656
    %v769 = vpack.c.b16 %v665, %v661
    %v770 = vpack.c.b16 %v666, %v662
    %v771 = vpack.c.b16 %v667, %v663
    %v772 = vpack.c.b16 %v668, %v664
    %v773 = vpack.c.b16 %v673, %v669
    %v774 = vpack.c.b16 %v674, %v670
    %v775 = vpack.c.b16 %v675, %v671
    %v776 = vpack.c.b16 %v676, %v672
    %v777 = vpack.c.b16 %v681, %v677
    %v778 = vpack.c.b16 %v682, %v678
    %v779 = vpack.c.b16 %v683, %v679
    %v780 = vpack.c.b16 %v684, %v680
    %v781 = vpack.c.b16 %v689, %v685
    %v782 = vpack.c.b16 %v690, %v686
    %v783 = vpack.c.b16 %v691, %v687
    %v784 = vpack.c.b16 %v692, %v688
    %v785 = vpack.c.b16 %v697, %v693
    %v786 = vpack.c.b16 %v698, %v694
    %v787 = vpack.c.b16 %v699, %v695
    %v788 = vpack.c.b16 %v700, %v696
    %v789 = vpack.c.b16 %v705, %v701
    %v790 = vpack.c.b16 %v706, %v702
    %v791 = vpack.c.b16 %v707, %v703
    %v792 = vpack.c.b16 %v708, %v704
    %v793 = vpack.c.b16 %v713, %v709
    %v794 = vpack.c.b16 %v714, %v710
    %v795 = vpack.c.b16 %v715, %v711
    %v796 = vpack.c.b16 %v716, %v712
    %v797 = vpack.c.b16 %v721, %v717
    %v798 = vpack.c.b16 %v722, %v718
    %v799 = vpack.c.b16 %v723, %v719
    %v800 = vpack.c.b16 %v724, %v720
    %v801 = vpack.c.b16 %v729, %v725
    %v802 = vpack.c.b16 %v730, %v726
    %v803 = vpack.c.b16 %v731, %v727
    %v804 = vpack.c.b16 %v732, %v728
    %v805 = vpack.c.b16 %v737, %v733
    %v806 = vpack.c.b16 %v738, %v734
    %v807 = vpack.c.b16 %v739, %v735
    %v808 = vpack.c.b16 %v740, %v736
    %v809 = vpack.c.b16 %v745, %v741
    %v810 = vpack.c.b16 %v746, %v742
    %v811 = vpack.c.b16 %v747, %v743
    %v812 = vpack.c.b16 %v748, %v744
    %877 = vmatprep.subr.bf16.mxu0 %v750
    %878 = vmatpush1.bf16.msra.mxu0 %v749
    %879 = vmatprep.subr.bf16.mxu0 %v754
    %880 = vmatpush1.bf16.msra.mxu0 %v753
    %881 = vmatprep.subr.bf16.mxu0 %v758
    %882 = vmatpush1.bf16.msra.mxu0 %v757
    %883 = vmatprep.subr.bf16.mxu0 %v762
    %884 = vmatpush1.bf16.msra.mxu0 %v761
    %885 = vmatprep.subr.bf16.mxu0 %v766
    %886 = vmatpush1.bf16.msra.mxu0 %v765
    %887 = vmatprep.subr.bf16.mxu0 %v770
    %888 = vmatpush1.bf16.msra.mxu0 %v769
    %889 = vmatprep.subr.bf16.mxu0 %v774
    %890 = vmatpush1.bf16.msra.mxu0 %v773
    %891 = vmatprep.subr.bf16.mxu0 %v778
    %892 = vmatpush1.bf16.msra.mxu0 %v777
    %893 = vmatprep.subr.bf16.mxu0 %v782
    %894 = vmatpush1.bf16.msra.mxu0 %v781
    %895 = vmatprep.subr.bf16.mxu0 %v786
    %896 = vmatpush1.bf16.msra.mxu0 %v785
    %897 = vmatprep.subr.bf16.mxu0 %v790
    %898 = vmatpush1.bf16.msra.mxu0 %v789
    %899 = vmatprep.subr.bf16.mxu0 %v794
    %900 = vmatpush1.bf16.msra.mxu0 %v793
    %901 = vmatprep.subr.bf16.mxu0 %v798
    %902 = vmatpush1.bf16.msra.mxu0 %v797
    %903 = vmatprep.subr.bf16.mxu0 %v802
    %904 = vmatpush1.bf16.msra.mxu0 %v801
    %905 = vmatprep.subr.bf16.mxu0 %v806
    %906 = vmatpush1.bf16.msra.mxu0 %v805
    %907 = vmatprep.subr.bf16.mxu0 %v810
    %908 = vmatpush1.bf16.msra.mxu0 %v809
    %909 = vmatprep.mubr.bf16.mxu0 %v492
    %910 = vmatmul.mubr.bf16.gmra.mrb[0].mxu0 %v491
    %v911 = vpop.f32.mrb[0].mxu0
    %v912 = vadd.f32 0.0, %v911
    %v913 = vpop.f32.mrb[0].mxu0
    %v914 = vadd.f32 0.0, %v913
    %v915 = vpop.f32.mrb[0].mxu0
    %v916 = vpop.f32.mrb[0].mxu0
    %917 = vdwg.mxu0
    %918 = vmatprep.subr.bf16.mxu0 %v752
    %919 = vmatpush1.bf16.msra.mxu0 %v751
    %920 = vmatprep.subr.bf16.mxu0 %v756
    %921 = vmatpush1.bf16.msra.mxu0 %v755
    %922 = vmatprep.subr.bf16.mxu0 %v760
    %923 = vmatpush1.bf16.msra.mxu0 %v759
    %924 = vmatprep.subr.bf16.mxu0 %v764
    %925 = vmatpush1.bf16.msra.mxu0 %v763
    %926 = vmatprep.subr.bf16.mxu0 %v768
    %927 = vmatpush1.bf16.msra.mxu0 %v767
    %928 = vmatprep.subr.bf16.mxu0 %v772
    %929 = vmatpush1.bf16.msra.mxu0 %v771
    %930 = vmatprep.subr.bf16.mxu0 %v776
    %931 = vmatpush1.bf16.msra.mxu0 %v775
    %932 = vmatprep.subr.bf16.mxu0 %v780
    %933 = vmatpush1.bf16.msra.mxu0 %v779
    %934 = vmatprep.subr.bf16.mxu0 %v784
    %935 = vmatpush1.bf16.msra.mxu0 %v783
    %936 = vmatprep.subr.bf16.mxu0 %v788
    %937 = vmatpush1.bf16.msra.mxu0 %v787
    %938 = vmatprep.subr.bf16.mxu0 %v792
    %939 = vmatpush1.bf16.msra.mxu0 %v791
    %940 = vmatprep.subr.bf16.mxu0 %v796
    %941 = vmatpush1.bf16.msra.mxu0 %v795
    %942 = vmatprep.subr.bf16.mxu0 %v800
    %943 = vmatpush1.bf16.msra.mxu0 %v799
    %944 = vmatprep.subr.bf16.mxu0 %v804
    %945 = vmatpush1.bf16.msra.mxu0 %v803
    %946 = vmatprep.subr.bf16.mxu0 %v808
    %947 = vmatpush1.bf16.msra.mxu0 %v807
    %948 = vmatprep.subr.bf16.mxu0 %v812
    %949 = vmatpush1.bf16.msra.mxu0 %v811
    %950 = vmatprep.mubr.bf16.mxu0 %v492
    %951 = vmatmul.mubr.bf16.gmra.mrb[0].mxu0 %v491
    %v952 = vpop.f32.mrb[0].mxu0
    %v953 = vadd.f32 0.0, %v952
    %v954 = vpop.f32.mrb[0].mxu0
    %v955 = vadd.f32 0.0, %v954
    %v956 = vpop.f32.mrb[0].mxu0
    %v957 = vpop.f32.mrb[0].mxu0
    %958 = vdwg.mxu0
    %v959 = vld [vmem:[#allocation10 + $0x5] sm:$0xf]
    %v960 = vld [vmem:[#allocation10 + $0x9] sm:$0xf]
    %v961 = vrot.slane %v912, 4
    %v962 = vadd.f32 %v912, %v961
    %v963 = vrot.slane %v962, 2
    %v964 = vadd.f32 %v962, %v963
    %v965 = vrot.slane %v964, 1
    %v966 = vadd.f32 %v964, %v965
    %v967 = vrot.slane %v914, 4
    %v968 = vadd.f32 %v914, %v967
    %v969 = vrot.slane %v968, 2
    %v970 = vadd.f32 %v968, %v969
    %v971 = vrot.slane %v970, 1
    %v972 = vadd.f32 %v970, %v971
    %v973 = vrot.slane %v953, 4
    %v974 = vadd.f32 %v953, %v973
    %v975 = vrot.slane %v974, 2
    %v976 = vadd.f32 %v974, %v975
    %v977 = vrot.slane %v976, 1
    %v978 = vadd.f32 %v976, %v977
    %v979 = vrot.slane %v955, 4
    %v980 = vadd.f32 %v955, %v979
    %v981 = vrot.slane %v980, 2
    %v982 = vadd.f32 %v980, %v981
    %v983 = vrot.slane %v982, 1
    %v984 = vadd.f32 %v982, %v983
    %v985 = vmul.f32 %v912, %v912
    %v986 = vmul.f32 %v914, %v914
    %v987 = vmul.f32 %v953, %v953
    %v988 = vmul.f32 %v955, %v955
    %v989 = vrot.slane %v985, 4
    %v990 = vadd.f32 %v985, %v989
    %v991 = vrot.slane %v990, 2
    %v992 = vadd.f32 %v990, %v991
    %v993 = vrot.slane %v992, 1
    %v994 = vadd.f32 %v992, %v993
    %v995 = vrot.slane %v986, 4
    %v996 = vadd.f32 %v986, %v995
    %v997 = vrot.slane %v996, 2
    %v998 = vadd.f32 %v996, %v997
    %v999 = vrot.slane %v998, 1
    %v1000 = vadd.f32 %v998, %v999
    %v1001 = vrot.slane %v987, 4
    %v1002 = vadd.f32 %v987, %v1001
    %v1003 = vrot.slane %v1002, 2
    %v1004 = vadd.f32 %v1002, %v1003
    %v1005 = vrot.slane %v1004, 1
    %v1006 = vadd.f32 %v1004, %v1005
    %v1007 = vrot.slane %v988, 4
    %v1008 = vadd.f32 %v988, %v1007
    %v1009 = vrot.slane %v1008, 2
    %v1010 = vadd.f32 %v1008, %v1009
    %v1011 = vrot.slane %v1010, 1
    %v1012 = vadd.f32 %v1010, %v1011
    %v1013 = vmul.f32 %v966, 0.125
    %v1014 = vmul.f32 %v972, 0.125
    %v1015 = vmul.f32 %v978, 0.125
    %v1016 = vmul.f32 %v984, 0.125
    %v1017 = vmul.f32 %v994, 0.125
    %v1018 = vmul.f32 %v1000, 0.125
    %v1019 = vmul.f32 %v1006, 0.125
    %v1020 = vmul.f32 %v1012, 0.125
    %v1021 = vmul.f32 %v1013, %v1013
    %v1022 = vmul.f32 %v1014, %v1014
    %v1023 = vmul.f32 %v1015, %v1015
    %v1024 = vmul.f32 %v1016, %v1016
    %v1025 = vsub.f32 %v1017, %v1021
    %v1026 = vsub.f32 %v1018, %v1022
    %v1027 = vsub.f32 %v1019, %v1023
    %v1028 = vsub.f32 %v1020, %v1024
    %v1029 = vadd.f32 %v1025, 0.8
    %v1030 = vadd.f32 %v1026, 0.8
    %v1031 = vadd.f32 %v1027, 0.8
    %v1032 = vadd.f32 %v1028, 0.8
    %v1033 = vrsqrt.pop %v1029
    %v1034 = vrsqrt.pop %v1030
    %v1035 = vrsqrt.pop %v1031
    %v1036 = vrsqrt.pop %v1032
    %v1041 = vcombine.low %v1033, %v1034
    %v1042 = vcombine.low %v1035, %v1036
    %v1044 = vunpack.c.l.s4 1966171168
    %v1045 = vunpack.c.0.s8 %v1044
    %v1046 = vlaneseq
    %v1047 = vshrl.u32 %v1046, 7
    %v1048 = vsub.s32 %v1045, %v1047
    %v1049 = vrot.slane %v1041, %v1048
    %v1051 = vunpack.c.l.s4 1966171168
    %v1052 = vunpack.c.0.s8 %v1051
    %v1053 = vlaneseq
    %v1054 = vshrl.u32 %v1053, 7
    %v1055 = vsub.s32 %v1052, %v1054
    %v1056 = vrot.slane %v1042, %v1055
    %v1057 = vcombine.low %v1049, %v1056
    %v1059 = vunpack.c.l.s4 1966171168
    %v1060 = vunpack.c.0.s8 %v1059
    %v1061 = vlaneseq
    %v1062 = vshrl.u32 %v1061, 7
    %v1063 = vsub.s32 %v1060, %v1062
    %v1064 = vrot.slane %v1057, %v1063
    %v1066 = vmul.f32 %v959, %v1064
    %v1068 = vlaneseq
    %v1069 = vshrl.u32 %v1068, 7
    %v1070 = vsub.s32 0, %v1069
    %v1071 = vrot.slane %v1066, %v1070
    %v1072 = vlaneseq
    %v1073 = vshrl.u32 %v1072, 7
    %v1074 = vsub.s32 1, %v1073
    %v1075 = vrot.slane %v1066, %v1074
    %v1076 = vlaneseq
    %v1077 = vshrl.u32 %v1076, 7
    %v1078 = vsub.s32 2, %v1077
    %v1079 = vrot.slane %v1066, %v1078
    %v1080 = vlaneseq
    %v1081 = vshrl.u32 %v1080, 7
    %v1082 = vsub.s32 3, %v1081
    %v1083 = vrot.slane %v1066, %v1082
    %v1088 = vmul.f32 %v1013, %v1071
    %v1089 = vmul.f32 %v1014, %v1075
    %v1090 = vmul.f32 %v1015, %v1079
    %v1091 = vmul.f32 %v1016, %v1083
    %v1096 = vcombine.low %v1088, %v1089
    %v1097 = vcombine.low %v1090, %v1091
    %v1099 = vunpack.c.l.s4 1966171168
    %v1100 = vunpack.c.0.s8 %v1099
    %v1101 = vlaneseq
    %v1102 = vshrl.u32 %v1101, 7
    %v1103 = vsub.s32 %v1100, %v1102
    %v1104 = vrot.slane %v1096, %v1103
    %v1106 = vunpack.c.l.s4 1966171168
    %v1107 = vunpack.c.0.s8 %v1106
    %v1108 = vlaneseq
    %v1109 = vshrl.u32 %v1108, 7
    %v1110 = vsub.s32 %v1107, %v1109
    %v1111 = vrot.slane %v1097, %v1110
    %v1112 = vcombine.low %v1104, %v1111
    %v1114 = vunpack.c.l.s4 1966171168
    %v1115 = vunpack.c.0.s8 %v1114
    %v1116 = vlaneseq
    %v1117 = vshrl.u32 %v1116, 7
    %v1118 = vsub.s32 %v1115, %v1117
    %v1119 = vrot.slane %v1112, %v1118
    %v1121 = vsub.f32 %v960, %v1119
    %v1122 = vmul.f32 %v912, %v1071
    %v1123 = vmul.f32 %v914, %v1075
    %v1124 = vmul.f32 %v953, %v1079
    %v1125 = vmul.f32 %v955, %v1083
    %v1127 = vlaneseq
    %v1128 = vshrl.u32 %v1127, 7
    %v1129 = vsub.s32 0, %v1128
    %v1130 = vrot.slane %v1121, %v1129
    %v1131 = vlaneseq
    %v1132 = vshrl.u32 %v1131, 7
    %v1133 = vsub.s32 1, %v1132
    %v1134 = vrot.slane %v1121, %v1133
    %v1135 = vlaneseq
    %v1136 = vshrl.u32 %v1135, 7
    %v1137 = vsub.s32 2, %v1136
    %v1138 = vrot.slane %v1121, %v1137
    %v1139 = vlaneseq
    %v1140 = vshrl.u32 %v1139, 7
    %v1141 = vsub.s32 3, %v1140
    %v1142 = vrot.slane %v1121, %v1141
    %v1147 = vadd.f32 %v1122, %v1130
    %v1148 = vadd.f32 %v1123, %v1134
    %v1149 = vadd.f32 %v1124, %v1138
    %v1150 = vadd.f32 %v1125, %v1142
    %vm1151 = vcmp.gt.f32.partialorder %v1147, 0.0
    %vm1152 = vcmp.gt.f32.partialorder %v1148, 0.0
    %vm1153 = vcmp.gt.f32.partialorder %v1149, 0.0
    %vm1154 = vcmp.gt.f32.partialorder %v1150, 0.0
    %v1155 = vmul.f32 %v1147, 0.2
    %v1156 = vmul.f32 %v1148, 0.2
    %v1157 = vmul.f32 %v1149, 0.2
    %v1158 = vmul.f32 %v1150, 0.2
    %v1159 = vsel %vm1151, %v1147, %v1155
    %v1160 = vsel %vm1152, %v1148, %v1156
    %v1161 = vsel %vm1153, %v1149, %v1157
    %v1162 = vsel %vm1154, %v1150, %v1158
    %s1163 = smul.u32 4, 64
    %s1164 = smul.u32 %s1163, 8
    %s1165 = sshll.u32 %s1164, 4
    %1166 = dma.done [#allocation4], %s1165
    %v1167 = vpack.c.bf16 %v1159, %v1159
    %v1168 = vpack.c.bf16 %v1160, %v1160
    %v1169 = vpack.c.bf16 %v1161, %v1161
    %v1170 = vpack.c.bf16 %v1162, %v1162
    %v1171 = vld [vmem:[#allocation2] sm:$0xff]
    %v1172 = vld [vmem:[#allocation2 + $0x8] sm:$0xff]
    %v1173 = vld [vmem:[#allocation2 + $0x10] sm:$0xff]
    %v1174 = vld [vmem:[#allocation2 + $0x18] sm:$0xff]
    %v1175 = vld [vmem:[#allocation2 + $0x20] sm:$0xff]
    %v1176 = vld [vmem:[#allocation2 + $0x28] sm:$0xff]
    %v1177 = vld [vmem:[#allocation2 + $0x30] sm:$0xff]
    %v1178 = vld [vmem:[#allocation2 + $0x38] sm:$0xff]
    %v1179 = vld [vmem:[#allocation2 + $0x40] sm:$0xff]
    %v1180 = vld [vmem:[#allocation2 + $0x48] sm:$0xff]
    %v1181 = vld [vmem:[#allocation2 + $0x50] sm:$0xff]
    %v1182 = vld [vmem:[#allocation2 + $0x58] sm:$0xff]
    %v1183 = vld [vmem:[#allocation2 + $0x60] sm:$0xff]
    %v1184 = vld [vmem:[#allocation2 + $0x68] sm:$0xff]
    %v1185 = vld [vmem:[#allocation2 + $0x70] sm:$0xff]
    %v1186 = vld [vmem:[#allocation2 + $0x78] sm:$0xff]
    %v1187 = vld [vmem:[#allocation2 + $0x80] sm:$0xff]
    %v1188 = vld [vmem:[#allocation2 + $0x88] sm:$0xff]
    %v1189 = vld [vmem:[#allocation2 + $0x90] sm:$0xff]
    %v1190 = vld [vmem:[#allocation2 + $0x98] sm:$0xff]
    %v1191 = vld [vmem:[#allocation2 + $0xa0] sm:$0xff]
    %v1192 = vld [vmem:[#allocation2 + $0xa8] sm:$0xff]
    %v1193 = vld [vmem:[#allocation2 + $0xb0] sm:$0xff]
    %v1194 = vld [vmem:[#allocation2 + $0xb8] sm:$0xff]
    %v1195 = vld [vmem:[#allocation2 + $0xc0] sm:$0xff]
    %v1196 = vld [vmem:[#allocation2 + $0xc8] sm:$0xff]
    %v1197 = vld [vmem:[#allocation2 + $0xd0] sm:$0xff]
    %v1198 = vld [vmem:[#allocation2 + $0xd8] sm:$0xff]
    %v1199 = vld [vmem:[#allocation2 + $0xe0] sm:$0xff]
    %v1200 = vld [vmem:[#allocation2 + $0xe8] sm:$0xff]
    %v1201 = vld [vmem:[#allocation2 + $0xf0] sm:$0xff]
    %v1202 = vld [vmem:[#allocation2 + $0xf8] sm:$0xff]
    %v1203 = vld [vmem:[#allocation2 + $0x100] sm:$0xff]
    %v1204 = vld [vmem:[#allocation2 + $0x108] sm:$0xff]
    %v1205 = vld [vmem:[#allocation2 + $0x110] sm:$0xff]
    %v1206 = vld [vmem:[#allocation2 + $0x118] sm:$0xff]
    %v1207 = vld [vmem:[#allocation2 + $0x120] sm:$0xff]
    %v1208 = vld [vmem:[#allocation2 + $0x128] sm:$0xff]
    %v1209 = vld [vmem:[#allocation2 + $0x130] sm:$0xff]
    %v1210 = vld [vmem:[#allocation2 + $0x138] sm:$0xff]
    %v1211 = vld [vmem:[#allocation2 + $0x140] sm:$0xff]
    %v1212 = vld [vmem:[#allocation2 + $0x148] sm:$0xff]
    %v1213 = vld [vmem:[#allocation2 + $0x150] sm:$0xff]
    %v1214 = vld [vmem:[#allocation2 + $0x158] sm:$0xff]
    %v1215 = vld [vmem:[#allocation2 + $0x160] sm:$0xff]
    %v1216 = vld [vmem:[#allocation2 + $0x168] sm:$0xff]
    %v1217 = vld [vmem:[#allocation2 + $0x170] sm:$0xff]
    %v1218 = vld [vmem:[#allocation2 + $0x178] sm:$0xff]
    %v1219 = vld [vmem:[#allocation2 + $0x180] sm:$0xff]
    %v1220 = vld [vmem:[#allocation2 + $0x188] sm:$0xff]
    %v1221 = vld [vmem:[#allocation2 + $0x190] sm:$0xff]
    %v1222 = vld [vmem:[#allocation2 + $0x198] sm:$0xff]
    %v1223 = vld [vmem:[#allocation2 + $0x1a0] sm:$0xff]
    %v1224 = vld [vmem:[#allocation2 + $0x1a8] sm:$0xff]
    %v1225 = vld [vmem:[#allocation2 + $0x1b0] sm:$0xff]
    %v1226 = vld [vmem:[#allocation2 + $0x1b8] sm:$0xff]
    %v1227 = vld [vmem:[#allocation2 + $0x1c0] sm:$0xff]
    %v1228 = vld [vmem:[#allocation2 + $0x1c8] sm:$0xff]
    %v1229 = vld [vmem:[#allocation2 + $0x1d0] sm:$0xff]
    %v1230 = vld [vmem:[#allocation2 + $0x1d8] sm:$0xff]
    %v1231 = vld [vmem:[#allocation2 + $0x1e0] sm:$0xff]
    %v1232 = vld [vmem:[#allocation2 + $0x1e8] sm:$0xff]
    %v1233 = vld [vmem:[#allocation2 + $0x1f0] sm:$0xff]
    %v1234 = vld [vmem:[#allocation2 + $0x1f8] sm:$0xff]
    %v1235 = vld [vmem:[#allocation2 + $0x200] sm:$0xff]
    %v1236 = vld [vmem:[#allocation2 + $0x208] sm:$0xff]
    %v1237 = vld [vmem:[#allocation2 + $0x210] sm:$0xff]
    %v1238 = vld [vmem:[#allocation2 + $0x218] sm:$0xff]
    %v1239 = vld [vmem:[#allocation2 + $0x220] sm:$0xff]
    %v1240 = vld [vmem:[#allocation2 + $0x228] sm:$0xff]
    %v1241 = vld [vmem:[#allocation2 + $0x230] sm:$0xff]
    %v1242 = vld [vmem:[#allocation2 + $0x238] sm:$0xff]
    %v1243 = vld [vmem:[#allocation2 + $0x240] sm:$0xff]
    %v1244 = vld [vmem:[#allocation2 + $0x248] sm:$0xff]
    %v1245 = vld [vmem:[#allocation2 + $0x250] sm:$0xff]
    %v1246 = vld [vmem:[#allocation2 + $0x258] sm:$0xff]
    %v1247 = vld [vmem:[#allocation2 + $0x260] sm:$0xff]
    %v1248 = vld [vmem:[#allocation2 + $0x268] sm:$0xff]
    %v1249 = vld [vmem:[#allocation2 + $0x270] sm:$0xff]
    %v1250 = vld [vmem:[#allocation2 + $0x278] sm:$0xff]
    %v1251 = vld [vmem:[#allocation2 + $0x280] sm:$0xff]
    %v1252 = vld [vmem:[#allocation2 + $0x288] sm:$0xff]
    %v1253 = vld [vmem:[#allocation2 + $0x290] sm:$0xff]
    %v1254 = vld [vmem:[#allocation2 + $0x298] sm:$0xff]
    %v1255 = vld [vmem:[#allocation2 + $0x2a0] sm:$0xff]
    %v1256 = vld [vmem:[#allocation2 + $0x2a8] sm:$0xff]
    %v1257 = vld [vmem:[#allocation2 + $0x2b0] sm:$0xff]
    %v1258 = vld [vmem:[#allocation2 + $0x2b8] sm:$0xff]
    %v1259 = vld [vmem:[#allocation2 + $0x2c0] sm:$0xff]
    %v1260 = vld [vmem:[#allocation2 + $0x2c8] sm:$0xff]
    %v1261 = vld [vmem:[#allocation2 + $0x2d0] sm:$0xff]
    %v1262 = vld [vmem:[#allocation2 + $0x2d8] sm:$0xff]
    %v1263 = vld [vmem:[#allocation2 + $0x2e0] sm:$0xff]
    %v1264 = vld [vmem:[#allocation2 + $0x2e8] sm:$0xff]
    %v1265 = vld [vmem:[#allocation2 + $0x2f0] sm:$0xff]
    %v1266 = vld [vmem:[#allocation2 + $0x2f8] sm:$0xff]
    %v1267 = vld [vmem:[#allocation2 + $0x300] sm:$0xff]
    %v1268 = vld [vmem:[#allocation2 + $0x308] sm:$0xff]
    %v1269 = vld [vmem:[#allocation2 + $0x310] sm:$0xff]
    %v1270 = vld [vmem:[#allocation2 + $0x318] sm:$0xff]
    %v1271 = vld [vmem:[#allocation2 + $0x320] sm:$0xff]
    %v1272 = vld [vmem:[#allocation2 + $0x328] sm:$0xff]
    %v1273 = vld [vmem:[#allocation2 + $0x330] sm:$0xff]
    %v1274 = vld [vmem:[#allocation2 + $0x338] sm:$0xff]
    %v1275 = vld [vmem:[#allocation2 + $0x340] sm:$0xff]
    %v1276 = vld [vmem:[#allocation2 + $0x348] sm:$0xff]
    %v1277 = vld [vmem:[#allocation2 + $0x350] sm:$0xff]
    %v1278 = vld [vmem:[#allocation2 + $0x358] sm:$0xff]
    %v1279 = vld [vmem:[#allocation2 + $0x360] sm:$0xff]
    %v1280 = vld [vmem:[#allocation2 + $0x368] sm:$0xff]
    %v1281 = vld [vmem:[#allocation2 + $0x370] sm:$0xff]
    %v1282 = vld [vmem:[#allocation2 + $0x378] sm:$0xff]
    %v1283 = vld [vmem:[#allocation2 + $0x380] sm:$0xff]
    %v1284 = vld [vmem:[#allocation2 + $0x388] sm:$0xff]
    %v1285 = vld [vmem:[#allocation2 + $0x390] sm:$0xff]
    %v1286 = vld [vmem:[#allocation2 + $0x398] sm:$0xff]
    %v1287 = vld [vmem:[#allocation2 + $0x3a0] sm:$0xff]
    %v1288 = vld [vmem:[#allocation2 + $0x3a8] sm:$0xff]
    %v1289 = vld [vmem:[#allocation2 + $0x3b0] sm:$0xff]
    %v1290 = vld [vmem:[#allocation2 + $0x3b8] sm:$0xff]
    %v1291 = vld [vmem:[#allocation2 + $0x3c0] sm:$0xff]
    %v1292 = vld [vmem:[#allocation2 + $0x3c8] sm:$0xff]
    %v1293 = vld [vmem:[#allocation2 + $0x3d0] sm:$0xff]
    %v1294 = vld [vmem:[#allocation2 + $0x3d8] sm:$0xff]
    %v1295 = vld [vmem:[#allocation2 + $0x3e0] sm:$0xff]
    %v1296 = vld [vmem:[#allocation2 + $0x3e8] sm:$0xff]
    %v1297 = vld [vmem:[#allocation2 + $0x3f0] sm:$0xff]
    %v1298 = vld [vmem:[#allocation2 + $0x3f8] sm:$0xff]
    %v1299 = vld [vmem:[#allocation2 + $0x400] sm:$0xff]
    %v1300 = vld [vmem:[#allocation2 + $0x408] sm:$0xff]
    %v1301 = vld [vmem:[#allocation2 + $0x410] sm:$0xff]
    %v1302 = vld [vmem:[#allocation2 + $0x418] sm:$0xff]
    %v1303 = vld [vmem:[#allocation2 + $0x420] sm:$0xff]
    %v1304 = vld [vmem:[#allocation2 + $0x428] sm:$0xff]
    %v1305 = vld [vmem:[#allocation2 + $0x430] sm:$0xff]
    %v1306 = vld [vmem:[#allocation2 + $0x438] sm:$0xff]
    %v1307 = vld [vmem:[#allocation2 + $0x440] sm:$0xff]
    %v1308 = vld [vmem:[#allocation2 + $0x448] sm:$0xff]
    %v1309 = vld [vmem:[#allocation2 + $0x450] sm:$0xff]
    %v1310 = vld [vmem:[#allocation2 + $0x458] sm:$0xff]
    %v1311 = vld [vmem:[#allocation2 + $0x460] sm:$0xff]
    %v1312 = vld [vmem:[#allocation2 + $0x468] sm:$0xff]
    %v1313 = vld [vmem:[#allocation2 + $0x470] sm:$0xff]
    %v1314 = vld [vmem:[#allocation2 + $0x478] sm:$0xff]
    %v1315 = vld [vmem:[#allocation2 + $0x480] sm:$0xff]
    %v1316 = vld [vmem:[#allocation2 + $0x488] sm:$0xff]
    %v1317 = vld [vmem:[#allocation2 + $0x490] sm:$0xff]
    %v1318 = vld [vmem:[#allocation2 + $0x498] sm:$0xff]
    %v1319 = vld [vmem:[#allocation2 + $0x4a0] sm:$0xff]
    %v1320 = vld [vmem:[#allocation2 + $0x4a8] sm:$0xff]
    %v1321 = vld [vmem:[#allocation2 + $0x4b0] sm:$0xff]
    %v1322 = vld [vmem:[#allocation2 + $0x4b8] sm:$0xff]
    %v1323 = vld [vmem:[#allocation2 + $0x4c0] sm:$0xff]
    %v1324 = vld [vmem:[#allocation2 + $0x4c8] sm:$0xff]
    %v1325 = vld [vmem:[#allocation2 + $0x4d0] sm:$0xff]
    %v1326 = vld [vmem:[#allocation2 + $0x4d8] sm:$0xff]
    %v1327 = vld [vmem:[#allocation2 + $0x4e0] sm:$0xff]
    %v1328 = vld [vmem:[#allocation2 + $0x4e8] sm:$0xff]
    %v1329 = vld [vmem:[#allocation2 + $0x4f0] sm:$0xff]
    %v1330 = vld [vmem:[#allocation2 + $0x4f8] sm:$0xff]
    %v1331 = vld [vmem:[#allocation2 + $0x500] sm:$0xff]
    %v1332 = vld [vmem:[#allocation2 + $0x508] sm:$0xff]
    %v1333 = vld [vmem:[#allocation2 + $0x510] sm:$0xff]
    %v1334 = vld [vmem:[#allocation2 + $0x518] sm:$0xff]
    %v1335 = vld [vmem:[#allocation2 + $0x520] sm:$0xff]
    %v1336 = vld [vmem:[#allocation2 + $0x528] sm:$0xff]
    %v1337 = vld [vmem:[#allocation2 + $0x530] sm:$0xff]
    %v1338 = vld [vmem:[#allocation2 + $0x538] sm:$0xff]
    %v1339 = vld [vmem:[#allocation2 + $0x540] sm:$0xff]
    %v1340 = vld [vmem:[#allocation2 + $0x548] sm:$0xff]
    %v1341 = vld [vmem:[#allocation2 + $0x550] sm:$0xff]
    %v1342 = vld [vmem:[#allocation2 + $0x558] sm:$0xff]
    %v1343 = vld [vmem:[#allocation2 + $0x560] sm:$0xff]
    %v1344 = vld [vmem:[#allocation2 + $0x568] sm:$0xff]
    %v1345 = vld [vmem:[#allocation2 + $0x570] sm:$0xff]
    %v1346 = vld [vmem:[#allocation2 + $0x578] sm:$0xff]
    %v1347 = vld [vmem:[#allocation2 + $0x580] sm:$0xff]
    %v1348 = vld [vmem:[#allocation2 + $0x588] sm:$0xff]
    %v1349 = vld [vmem:[#allocation2 + $0x590] sm:$0xff]
    %v1350 = vld [vmem:[#allocation2 + $0x598] sm:$0xff]
    %v1351 = vld [vmem:[#allocation2 + $0x5a0] sm:$0xff]
    %v1352 = vld [vmem:[#allocation2 + $0x5a8] sm:$0xff]
    %v1353 = vld [vmem:[#allocation2 + $0x5b0] sm:$0xff]
    %v1354 = vld [vmem:[#allocation2 + $0x5b8] sm:$0xff]
    %v1355 = vld [vmem:[#allocation2 + $0x5c0] sm:$0xff]
    %v1356 = vld [vmem:[#allocation2 + $0x5c8] sm:$0xff]
    %v1357 = vld [vmem:[#allocation2 + $0x5d0] sm:$0xff]
    %v1358 = vld [vmem:[#allocation2 + $0x5d8] sm:$0xff]
    %v1359 = vld [vmem:[#allocation2 + $0x5e0] sm:$0xff]
    %v1360 = vld [vmem:[#allocation2 + $0x5e8] sm:$0xff]
    %v1361 = vld [vmem:[#allocation2 + $0x5f0] sm:$0xff]
    %v1362 = vld [vmem:[#allocation2 + $0x5f8] sm:$0xff]
    %v1363 = vld [vmem:[#allocation2 + $0x600] sm:$0xff]
    %v1364 = vld [vmem:[#allocation2 + $0x608] sm:$0xff]
    %v1365 = vld [vmem:[#allocation2 + $0x610] sm:$0xff]
    %v1366 = vld [vmem:[#allocation2 + $0x618] sm:$0xff]
    %v1367 = vld [vmem:[#allocation2 + $0x620] sm:$0xff]
    %v1368 = vld [vmem:[#allocation2 + $0x628] sm:$0xff]
    %v1369 = vld [vmem:[#allocation2 + $0x630] sm:$0xff]
    %v1370 = vld [vmem:[#allocation2 + $0x638] sm:$0xff]
    %v1371 = vld [vmem:[#allocation2 + $0x640] sm:$0xff]
    %v1372 = vld [vmem:[#allocation2 + $0x648] sm:$0xff]
    %v1373 = vld [vmem:[#allocation2 + $0x650] sm:$0xff]
    %v1374 = vld [vmem:[#allocation2 + $0x658] sm:$0xff]
    %v1375 = vld [vmem:[#allocation2 + $0x660] sm:$0xff]
    %v1376 = vld [vmem:[#allocation2 + $0x668] sm:$0xff]
    %v1377 = vld [vmem:[#allocation2 + $0x670] sm:$0xff]
    %v1378 = vld [vmem:[#allocation2 + $0x678] sm:$0xff]
    %v1379 = vld [vmem:[#allocation2 + $0x680] sm:$0xff]
    %v1380 = vld [vmem:[#allocation2 + $0x688] sm:$0xff]
    %v1381 = vld [vmem:[#allocation2 + $0x690] sm:$0xff]
    %v1382 = vld [vmem:[#allocation2 + $0x698] sm:$0xff]
    %v1383 = vld [vmem:[#allocation2 + $0x6a0] sm:$0xff]
    %v1384 = vld [vmem:[#allocation2 + $0x6a8] sm:$0xff]
    %v1385 = vld [vmem:[#allocation2 + $0x6b0] sm:$0xff]
    %v1386 = vld [vmem:[#allocation2 + $0x6b8] sm:$0xff]
    %v1387 = vld [vmem:[#allocation2 + $0x6c0] sm:$0xff]
    %v1388 = vld [vmem:[#allocation2 + $0x6c8] sm:$0xff]
    %v1389 = vld [vmem:[#allocation2 + $0x6d0] sm:$0xff]
    %v1390 = vld [vmem:[#allocation2 + $0x6d8] sm:$0xff]
    %v1391 = vld [vmem:[#allocation2 + $0x6e0] sm:$0xff]
    %v1392 = vld [vmem:[#allocation2 + $0x6e8] sm:$0xff]
    %v1393 = vld [vmem:[#allocation2 + $0x6f0] sm:$0xff]
    %v1394 = vld [vmem:[#allocation2 + $0x6f8] sm:$0xff]
    %v1395 = vld [vmem:[#allocation2 + $0x700] sm:$0xff]
    %v1396 = vld [vmem:[#allocation2 + $0x708] sm:$0xff]
    %v1397 = vld [vmem:[#allocation2 + $0x710] sm:$0xff]
    %v1398 = vld [vmem:[#allocation2 + $0x718] sm:$0xff]
    %v1399 = vld [vmem:[#allocation2 + $0x720] sm:$0xff]
    %v1400 = vld [vmem:[#allocation2 + $0x728] sm:$0xff]
    %v1401 = vld [vmem:[#allocation2 + $0x730] sm:$0xff]
    %v1402 = vld [vmem:[#allocation2 + $0x738] sm:$0xff]
    %v1403 = vld [vmem:[#allocation2 + $0x740] sm:$0xff]
    %v1404 = vld [vmem:[#allocation2 + $0x748] sm:$0xff]
    %v1405 = vld [vmem:[#allocation2 + $0x750] sm:$0xff]
    %v1406 = vld [vmem:[#allocation2 + $0x758] sm:$0xff]
    %v1407 = vld [vmem:[#allocation2 + $0x760] sm:$0xff]
    %v1408 = vld [vmem:[#allocation2 + $0x768] sm:$0xff]
    %v1409 = vld [vmem:[#allocation2 + $0x770] sm:$0xff]
    %v1410 = vld [vmem:[#allocation2 + $0x778] sm:$0xff]
    %v1411 = vld [vmem:[#allocation2 + $0x780] sm:$0xff]
    %v1412 = vld [vmem:[#allocation2 + $0x788] sm:$0xff]
    %v1413 = vld [vmem:[#allocation2 + $0x790] sm:$0xff]
    %v1414 = vld [vmem:[#allocation2 + $0x798] sm:$0xff]
    %v1415 = vld [vmem:[#allocation2 + $0x7a0] sm:$0xff]
    %v1416 = vld [vmem:[#allocation2 + $0x7a8] sm:$0xff]
    %v1417 = vld [vmem:[#allocation2 + $0x7b0] sm:$0xff]
    %v1418 = vld [vmem:[#allocation2 + $0x7b8] sm:$0xff]
    %v1419 = vld [vmem:[#allocation2 + $0x7c0] sm:$0xff]
    %v1420 = vld [vmem:[#allocation2 + $0x7c8] sm:$0xff]
    %v1421 = vld [vmem:[#allocation2 + $0x7d0] sm:$0xff]
    %v1422 = vld [vmem:[#allocation2 + $0x7d8] sm:$0xff]
    %v1423 = vld [vmem:[#allocation2 + $0x7e0] sm:$0xff]
    %v1424 = vld [vmem:[#allocation2 + $0x7e8] sm:$0xff]
    %v1425 = vld [vmem:[#allocation2 + $0x7f0] sm:$0xff]
    %v1426 = vld [vmem:[#allocation2 + $0x7f8] sm:$0xff]
    %1427 = vmatprep.subr.bf16.mxu0 %v1172
    %1428 = vmatpush1.bf16.msra.mxu0 %v1171
    %1429 = vmatprep.subr.bf16.mxu0 %v1180
    %1430 = vmatpush1.bf16.msra.mxu0 %v1179
    %1431 = vmatprep.subr.bf16.mxu0 %v1188
    %1432 = vmatpush1.bf16.msra.mxu0 %v1187
    %1433 = vmatprep.subr.bf16.mxu0 %v1196
    %1434 = vmatpush1.bf16.msra.mxu0 %v1195
    %1435 = vmatprep.subr.bf16.mxu0 %v1204
    %1436 = vmatpush1.bf16.msra.mxu0 %v1203
    %1437 = vmatprep.subr.bf16.mxu0 %v1212
    %1438 = vmatpush1.bf16.msra.mxu0 %v1211
    %1439 = vmatprep.subr.bf16.mxu0 %v1220
    %1440 = vmatpush1.bf16.msra.mxu0 %v1219
    %1441 = vmatprep.subr.bf16.mxu0 %v1228
    %1442 = vmatpush1.bf16.msra.mxu0 %v1227
    %1443 = vmatprep.subr.bf16.mxu0 %v1236
    %1444 = vmatpush1.bf16.msra.mxu0 %v1235
    %1445 = vmatprep.subr.bf16.mxu0 %v1244
    %1446 = vmatpush1.bf16.msra.mxu0 %v1243
    %1447 = vmatprep.subr.bf16.mxu0 %v1252
    %1448 = vmatpush1.bf16.msra.mxu0 %v1251
    %1449 = vmatprep.subr.bf16.mxu0 %v1260
    %1450 = vmatpush1.bf16.msra.mxu0 %v1259
    %1451 = vmatprep.subr.bf16.mxu0 %v1268
    %1452 = vmatpush1.bf16.msra.mxu0 %v1267
    %1453 = vmatprep.subr.bf16.mxu0 %v1276
    %1454 = vmatpush1.bf16.msra.mxu0 %v1275
    %1455 = vmatprep.subr.bf16.mxu0 %v1284
    %1456 = vmatpush1.bf16.msra.mxu0 %v1283
    %1457 = vmatprep.subr.bf16.mxu0 %v1292
    %1458 = vmatpush1.bf16.msra.mxu0 %v1291
    %1459 = vmatprep.mubr.bf16.mxu0 %v1168
    %1460 = vmatmul.mubr.bf16.gmra.mrb[0].mxu0 %v1167
    %v1461 = vpop.f32.mrb[0].mxu0
    %v1462 = vadd.f32 0.0, %v1461
    %v1463 = vpop.f32.mrb[0].mxu0
    %v1464 = vadd.f32 0.0, %v1463
    %v1465 = vpop.f32.mrb[0].mxu0
    %v1466 = vpop.f32.mrb[0].mxu0
    %1467 = vdwg.mxu0
    %1468 = vmatprep.subr.bf16.mxu0 %v1300
    %1469 = vmatpush1.bf16.msra.mxu0 %v1299
    %1470 = vmatprep.subr.bf16.mxu0 %v1308
    %1471 = vmatpush1.bf16.msra.mxu0 %v1307
    %1472 = vmatprep.subr.bf16.mxu0 %v1316
    %1473 = vmatpush1.bf16.msra.mxu0 %v1315
    %1474 = vmatprep.subr.bf16.mxu0 %v1324
    %1475 = vmatpush1.bf16.msra.mxu0 %v1323
    %1476 = vmatprep.subr.bf16.mxu0 %v1332
    %1477 = vmatpush1.bf16.msra.mxu0 %v1331
    %1478 = vmatprep.subr.bf16.mxu0 %v1340
    %1479 = vmatpush1.bf16.msra.mxu0 %v1339
    %1480 = vmatprep.subr.bf16.mxu0 %v1348
    %1481 = vmatpush1.bf16.msra.mxu0 %v1347
    %1482 = vmatprep.subr.bf16.mxu0 %v1356
    %1483 = vmatpush1.bf16.msra.mxu0 %v1355
    %1484 = vmatprep.subr.bf16.mxu0 %v1364
    %1485 = vmatpush1.bf16.msra.mxu0 %v1363
    %1486 = vmatprep.subr.bf16.mxu0 %v1372
    %1487 = vmatpush1.bf16.msra.mxu0 %v1371
    %1488 = vmatprep.subr.bf16.mxu0 %v1380
    %1489 = vmatpush1.bf16.msra.mxu0 %v1379
    %1490 = vmatprep.subr.bf16.mxu0 %v1388
    %1491 = vmatpush1.bf16.msra.mxu0 %v1387
    %1492 = vmatprep.subr.bf16.mxu0 %v1396
    %1493 = vmatpush1.bf16.msra.mxu0 %v1395
    %1494 = vmatprep.subr.bf16.mxu0 %v1404
    %1495 = vmatpush1.bf16.msra.mxu0 %v1403
    %1496 = vmatprep.subr.bf16.mxu0 %v1412
    %1497 = vmatpush1.bf16.msra.mxu0 %v1411
    %1498 = vmatprep.subr.bf16.mxu0 %v1420
    %1499 = vmatpush1.bf16.msra.mxu0 %v1419
    %1500 = vmatprep.mubr.bf16.mxu0 %v1170
    %1501 = vmatmul.mubr.bf16.gmra.mrb[0].mxu0 %v1169
    %v1502 = vpop.f32.mrb[0].mxu0
    %v1503 = vadd.f32 %v1462, %v1502
    %v1504 = vpop.f32.mrb[0].mxu0
    %v1505 = vadd.f32 %v1464, %v1504
    %v1506 = vpop.f32.mrb[0].mxu0
    %v1507 = vpop.f32.mrb[0].mxu0
    %1508 = vdwg.mxu0
    %1509 = vmatprep.subr.bf16.mxu0 %v1174
    %1510 = vmatpush1.bf16.msra.mxu0 %v1173
    %1511 = vmatprep.subr.bf16.mxu0 %v1182
    %1512 = vmatpush1.bf16.msra.mxu0 %v1181
    %1513 = vmatprep.subr.bf16.mxu0 %v1190
    %1514 = vmatpush1.bf16.msra.mxu0 %v1189
    %1515 = vmatprep.subr.bf16.mxu0 %v1198
    %1516 = vmatpush1.bf16.msra.mxu0 %v1197
    %1517 = vmatprep.subr.bf16.mxu0 %v1206
    %1518 = vmatpush1.bf16.msra.mxu0 %v1205
    %1519 = vmatprep.subr.bf16.mxu0 %v1214
    %1520 = vmatpush1.bf16.msra.mxu0 %v1213
    %1521 = vmatprep.subr.bf16.mxu0 %v1222
    %1522 = vmatpush1.bf16.msra.mxu0 %v1221
    %1523 = vmatprep.subr.bf16.mxu0 %v1230
    %1524 = vmatpush1.bf16.msra.mxu0 %v1229
    %1525 = vmatprep.subr.bf16.mxu0 %v1238
    %1526 = vmatpush1.bf16.msra.mxu0 %v1237
    %1527 = vmatprep.subr.bf16.mxu0 %v1246
    %1528 = vmatpush1.bf16.msra.mxu0 %v1245
    %1529 = vmatprep.subr.bf16.mxu0 %v1254
    %1530 = vmatpush1.bf16.msra.mxu0 %v1253
    %1531 = vmatprep.subr.bf16.mxu0 %v1262
    %1532 = vmatpush1.bf16.msra.mxu0 %v1261
    %1533 = vmatprep.subr.bf16.mxu0 %v1270
    %1534 = vmatpush1.bf16.msra.mxu0 %v1269
    %1535 = vmatprep.subr.bf16.mxu0 %v1278
    %1536 = vmatpush1.bf16.msra.mxu0 %v1277
    %1537 = vmatprep.subr.bf16.mxu0 %v1286
    %1538 = vmatpush1.bf16.msra.mxu0 %v1285
    %1539 = vmatprep.subr.bf16.mxu0 %v1294
    %1540 = vmatpush1.bf16.msra.mxu0 %v1293
    %1541 = vmatprep.mubr.bf16.mxu0 %v1168
    %1542 = vmatmul.mubr.bf16.gmra.mrb[0].mxu0 %v1167
    %v1543 = vpop.f32.mrb[0].mxu0
    %v1544 = vadd.f32 0.0, %v1543
    %v1545 = vpop.f32.mrb[0].mxu0
    %v1546 = vadd.f32 0.0, %v1545
    %v1547 = vpop.f32.mrb[0].mxu0
    %v1548 = vpop.f32.mrb[0].mxu0
    %1549 = vdwg.mxu0
    %1550 = vmatprep.subr.bf16.mxu0 %v1302
    %1551 = vmatpush1.bf16.msra.mxu0 %v1301
    %1552 = vmatprep.subr.bf16.mxu0 %v1310
    %1553 = vmatpush1.bf16.msra.mxu0 %v1309
    %1554 = vmatprep.subr.bf16.mxu0 %v1318
    %1555 = vmatpush1.bf16.msra.mxu0 %v1317
    %1556 = vmatprep.subr.bf16.mxu0 %v1326
    %1557 = vmatpush1.bf16.msra.mxu0 %v1325
    %1558 = vmatprep.subr.bf16.mxu0 %v1334
    %1559 = vmatpush1.bf16.msra.mxu0 %v1333
    %1560 = vmatprep.subr.bf16.mxu0 %v1342
    %1561 = vmatpush1.bf16.msra.mxu0 %v1341
    %1562 = vmatprep.subr.bf16.mxu0 %v1350
    %1563 = vmatpush1.bf16.msra.mxu0 %v1349
    %1564 = vmatprep.subr.bf16.mxu0 %v1358
    %1565 = vmatpush1.bf16.msra.mxu0 %v1357
    %1566 = vmatprep.subr.bf16.mxu0 %v1366
    %1567 = vmatpush1.bf16.msra.mxu0 %v1365
    %1568 = vmatprep.subr.bf16.mxu0 %v1374
    %1569 = vmatpush1.bf16.msra.mxu0 %v1373
    %1570 = vmatprep.subr.bf16.mxu0 %v1382
    %1571 = vmatpush1.bf16.msra.mxu0 %v1381
    %1572 = vmatprep.subr.bf16.mxu0 %v1390
    %1573 = vmatpush1.bf16.msra.mxu0 %v1389
    %1574 = vmatprep.subr.bf16.mxu0 %v1398
    %1575 = vmatpush1.bf16.msra.mxu0 %v1397
    %1576 = vmatprep.subr.bf16.mxu0 %v1406
    %1577 = vmatpush1.bf16.msra.mxu0 %v1405
    %1578 = vmatprep.subr.bf16.mxu0 %v1414
    %1579 = vmatpush1.bf16.msra.mxu0 %v1413
    %1580 = vmatprep.subr.bf16.mxu0 %v1422
    %1581 = vmatpush1.bf16.msra.mxu0 %v1421
    %1582 = vmatprep.mubr.bf16.mxu0 %v1170
    %1583 = vmatmul.mubr.bf16.gmra.mrb[0].mxu0 %v1169
    %v1584 = vpop.f32.mrb[0].mxu0
    %v1585 = vadd.f32 %v1544, %v1584
    %v1586 = vpop.f32.mrb[0].mxu0
    %v1587 = vadd.f32 %v1546, %v1586
    %v1588 = vpop.f32.mrb[0].mxu0
    %v1589 = vpop.f32.mrb[0].mxu0
    %1590 = vdwg.mxu0
    %1591 = vmatprep.subr.bf16.mxu0 %v1176
    %1592 = vmatpush1.bf16.msra.mxu0 %v1175
    %1593 = vmatprep.subr.bf16.mxu0 %v1184
    %1594 = vmatpush1.bf16.msra.mxu0 %v1183
    %1595 = vmatprep.subr.bf16.mxu0 %v1192
    %1596 = vmatpush1.bf16.msra.mxu0 %v1191
    %1597 = vmatprep.subr.bf16.mxu0 %v1200
    %1598 = vmatpush1.bf16.msra.mxu0 %v1199
    %1599 = vmatprep.subr.bf16.mxu0 %v1208
    %1600 = vmatpush1.bf16.msra.mxu0 %v1207
    %1601 = vmatprep.subr.bf16.mxu0 %v1216
    %1602 = vmatpush1.bf16.msra.mxu0 %v1215
    %1603 = vmatprep.subr.bf16.mxu0 %v1224
    %1604 = vmatpush1.bf16.msra.mxu0 %v1223
    %1605 = vmatprep.subr.bf16.mxu0 %v1232
    %1606 = vmatpush1.bf16.msra.mxu0 %v1231
    %1607 = vmatprep.subr.bf16.mxu0 %v1240
    %1608 = vmatpush1.bf16.msra.mxu0 %v1239
    %1609 = vmatprep.subr.bf16.mxu0 %v1248
    %1610 = vmatpush1.bf16.msra.mxu0 %v1247
    %1611 = vmatprep.subr.bf16.mxu0 %v1256
    %1612 = vmatpush1.bf16.msra.mxu0 %v1255
    %1613 = vmatprep.subr.bf16.mxu0 %v1264
    %1614 = vmatpush1.bf16.msra.mxu0 %v1263
    %1615 = vmatprep.subr.bf16.mxu0 %v1272
    %1616 = vmatpush1.bf16.msra.mxu0 %v1271
    %1617 = vmatprep.subr.bf16.mxu0 %v1280
    %1618 = vmatpush1.bf16.msra.mxu0 %v1279
    %1619 = vmatprep.subr.bf16.mxu0 %v1288
    %1620 = vmatpush1.bf16.msra.mxu0 %v1287
    %1621 = vmatprep.subr.bf16.mxu0 %v1296
    %1622 = vmatpush1.bf16.msra.mxu0 %v1295
    %1623 = vmatprep.mubr.bf16.mxu0 %v1168
    %1624 = vmatmul.mubr.bf16.gmra.mrb[0].mxu0 %v1167
    %v1625 = vpop.f32.mrb[0].mxu0
    %v1626 = vadd.f32 0.0, %v1625
    %v1627 = vpop.f32.mrb[0].mxu0
    %v1628 = vadd.f32 0.0, %v1627
    %v1629 = vpop.f32.mrb[0].mxu0
    %v1630 = vpop.f32.mrb[0].mxu0
    %1631 = vdwg.mxu0
    %1632 = vmatprep.subr.bf16.mxu0 %v1304
    %1633 = vmatpush1.bf16.msra.mxu0 %v1303
    %1634 = vmatprep.subr.bf16.mxu0 %v1312
    %1635 = vmatpush1.bf16.msra.mxu0 %v1311
    %1636 = vmatprep.subr.bf16.mxu0 %v1320
    %1637 = vmatpush1.bf16.msra.mxu0 %v1319
    %1638 = vmatprep.subr.bf16.mxu0 %v1328
    %1639 = vmatpush1.bf16.msra.mxu0 %v1327
    %1640 = vmatprep.subr.bf16.mxu0 %v1336
    %1641 = vmatpush1.bf16.msra.mxu0 %v1335
    %1642 = vmatprep.subr.bf16.mxu0 %v1344
    %1643 = vmatpush1.bf16.msra.mxu0 %v1343
    %1644 = vmatprep.subr.bf16.mxu0 %v1352
    %1645 = vmatpush1.bf16.msra.mxu0 %v1351
    %1646 = vmatprep.subr.bf16.mxu0 %v1360
    %1647 = vmatpush1.bf16.msra.mxu0 %v1359
    %1648 = vmatprep.subr.bf16.mxu0 %v1368
    %1649 = vmatpush1.bf16.msra.mxu0 %v1367
    %1650 = vmatprep.subr.bf16.mxu0 %v1376
    %1651 = vmatpush1.bf16.msra.mxu0 %v1375
    %1652 = vmatprep.subr.bf16.mxu0 %v1384
    %1653 = vmatpush1.bf16.msra.mxu0 %v1383
    %1654 = vmatprep.subr.bf16.mxu0 %v1392
    %1655 = vmatpush1.bf16.msra.mxu0 %v1391
    %1656 = vmatprep.subr.bf16.mxu0 %v1400
    %1657 = vmatpush1.bf16.msra.mxu0 %v1399
    %1658 = vmatprep.subr.bf16.mxu0 %v1408
    %1659 = vmatpush1.bf16.msra.mxu0 %v1407
    %1660 = vmatprep.subr.bf16.mxu0 %v1416
    %1661 = vmatpush1.bf16.msra.mxu0 %v1415
    %1662 = vmatprep.subr.bf16.mxu0 %v1424
    %1663 = vmatpush1.bf16.msra.mxu0 %v1423
    %1664 = vmatprep.mubr.bf16.mxu0 %v1170
    %1665 = vmatmul.mubr.bf16.gmra.mrb[0].mxu0 %v1169
    %v1666 = vpop.f32.mrb[0].mxu0
    %v1667 = vadd.f32 %v1626, %v1666
    %v1668 = vpop.f32.mrb[0].mxu0
    %v1669 = vadd.f32 %v1628, %v1668
    %v1670 = vpop.f32.mrb[0].mxu0
    %v1671 = vpop.f32.mrb[0].mxu0
    %1672 = vdwg.mxu0
    %1673 = vmatprep.subr.bf16.mxu0 %v1178
    %1674 = vmatpush1.bf16.msra.mxu0 %v1177
    %1675 = vmatprep.subr.bf16.mxu0 %v1186
    %1676 = vmatpush1.bf16.msra.mxu0 %v1185
    %1677 = vmatprep.subr.bf16.mxu0 %v1194
    %1678 = vmatpush1.bf16.msra.mxu0 %v1193
    %1679 = vmatprep.subr.bf16.mxu0 %v1202
    %1680 = vmatpush1.bf16.msra.mxu0 %v1201
    %1681 = vmatprep.subr.bf16.mxu0 %v1210
    %1682 = vmatpush1.bf16.msra.mxu0 %v1209
    %1683 = vmatprep.subr.bf16.mxu0 %v1218
    %1684 = vmatpush1.bf16.msra.mxu0 %v1217
    %1685 = vmatprep.subr.bf16.mxu0 %v1226
    %1686 = vmatpush1.bf16.msra.mxu0 %v1225
    %1687 = vmatprep.subr.bf16.mxu0 %v1234
    %1688 = vmatpush1.bf16.msra.mxu0 %v1233
    %1689 = vmatprep.subr.bf16.mxu0 %v1242
    %1690 = vmatpush1.bf16.msra.mxu0 %v1241
    %1691 = vmatprep.subr.bf16.mxu0 %v1250
    %1692 = vmatpush1.bf16.msra.mxu0 %v1249
    %1693 = vmatprep.subr.bf16.mxu0 %v1258
    %1694 = vmatpush1.bf16.msra.mxu0 %v1257
    %1695 = vmatprep.subr.bf16.mxu0 %v1266
    %1696 = vmatpush1.bf16.msra.mxu0 %v1265
    %1697 = vmatprep.subr.bf16.mxu0 %v1274
    %1698 = vmatpush1.bf16.msra.mxu0 %v1273
    %1699 = vmatprep.subr.bf16.mxu0 %v1282
    %1700 = vmatpush1.bf16.msra.mxu0 %v1281
    %1701 = vmatprep.subr.bf16.mxu0 %v1290
    %1702 = vmatpush1.bf16.msra.mxu0 %v1289
    %1703 = vmatprep.subr.bf16.mxu0 %v1298
    %1704 = vmatpush1.bf16.msra.mxu0 %v1297
    %1705 = vmatprep.mubr.bf16.mxu0 %v1168
    %1706 = vmatmul.mubr.bf16.gmra.mrb[0].mxu0 %v1167
    %v1707 = vpop.f32.mrb[0].mxu0
    %v1708 = vadd.f32 0.0, %v1707
    %v1709 = vpop.f32.mrb[0].mxu0
    %v1710 = vadd.f32 0.0, %v1709
    %v1711 = vpop.f32.mrb[0].mxu0
    %v1712 = vpop.f32.mrb[0].mxu0
    %1713 = vdwg.mxu0
    %1714 = vmatprep.subr.bf16.mxu0 %v1306
    %1715 = vmatpush1.bf16.msra.mxu0 %v1305
    %1716 = vmatprep.subr.bf16.mxu0 %v1314
    %1717 = vmatpush1.bf16.msra.mxu0 %v1313
    %1718 = vmatprep.subr.bf16.mxu0 %v1322
    %1719 = vmatpush1.bf16.msra.mxu0 %v1321
    %1720 = vmatprep.subr.bf16.mxu0 %v1330
    %1721 = vmatpush1.bf16.msra.mxu0 %v1329
    %1722 = vmatprep.subr.bf16.mxu0 %v1338
    %1723 = vmatpush1.bf16.msra.mxu0 %v1337
    %1724 = vmatprep.subr.bf16.mxu0 %v1346
    %1725 = vmatpush1.bf16.msra.mxu0 %v1345
    %1726 = vmatprep.subr.bf16.mxu0 %v1354
    %1727 = vmatpush1.bf16.msra.mxu0 %v1353
    %1728 = vmatprep.subr.bf16.mxu0 %v1362
    %1729 = vmatpush1.bf16.msra.mxu0 %v1361
    %1730 = vmatprep.subr.bf16.mxu0 %v1370
    %1731 = vmatpush1.bf16.msra.mxu0 %v1369
    %1732 = vmatprep.subr.bf16.mxu0 %v1378
    %1733 = vmatpush1.bf16.msra.mxu0 %v1377
    %1734 = vmatprep.subr.bf16.mxu0 %v1386
    %1735 = vmatpush1.bf16.msra.mxu0 %v1385
    %1736 = vmatprep.subr.bf16.mxu0 %v1394
    %1737 = vmatpush1.bf16.msra.mxu0 %v1393
    %1738 = vmatprep.subr.bf16.mxu0 %v1402
    %1739 = vmatpush1.bf16.msra.mxu0 %v1401
    %1740 = vmatprep.subr.bf16.mxu0 %v1410
    %1741 = vmatpush1.bf16.msra.mxu0 %v1409
    %1742 = vmatprep.subr.bf16.mxu0 %v1418
    %1743 = vmatpush1.bf16.msra.mxu0 %v1417
    %1744 = vmatprep.subr.bf16.mxu0 %v1426
    %1745 = vmatpush1.bf16.msra.mxu0 %v1425
    %1746 = vmatprep.mubr.bf16.mxu0 %v1170
    %1747 = vmatmul.mubr.bf16.gmra.mrb[0].mxu0 %v1169
    %v1748 = vpop.f32.mrb[0].mxu0
    %v1749 = vadd.f32 %v1708, %v1748
    %v1750 = vpop.f32.mrb[0].mxu0
    %v1751 = vadd.f32 %v1710, %v1750
    %v1752 = vpop.f32.mrb[0].mxu0
    %v1753 = vpop.f32.mrb[0].mxu0
    %1754 = vdwg.mxu0
    %v1755 = vld [vmem:[#allocation10 + $0xd] sm:$0xff]
    %v1756 = vld [vmem:[#allocation10 + $0x15] sm:$0xff]
    %v1757 = vrot.slane %v1503, 4
    %v1758 = vadd.f32 %v1503, %v1757
    %v1759 = vrot.slane %v1758, 2
    %v1760 = vadd.f32 %v1758, %v1759
    %v1761 = vrot.slane %v1760, 1
    %v1762 = vadd.f32 %v1760, %v1761
    %v1763 = vrot.slane %v1505, 4
    %v1764 = vadd.f32 %v1505, %v1763
    %v1765 = vrot.slane %v1764, 2
    %v1766 = vadd.f32 %v1764, %v1765
    %v1767 = vrot.slane %v1766, 1
    %v1768 = vadd.f32 %v1766, %v1767
    %v1769 = vrot.slane %v1585, 4
    %v1770 = vadd.f32 %v1585, %v1769
    %v1771 = vrot.slane %v1770, 2
    %v1772 = vadd.f32 %v1770, %v1771
    %v1773 = vrot.slane %v1772, 1
    %v1774 = vadd.f32 %v1772, %v1773
    %v1775 = vrot.slane %v1587, 4
    %v1776 = vadd.f32 %v1587, %v1775
    %v1777 = vrot.slane %v1776, 2
    %v1778 = vadd.f32 %v1776, %v1777
    %v1779 = vrot.slane %v1778, 1
    %v1780 = vadd.f32 %v1778, %v1779
    %v1781 = vrot.slane %v1667, 4
    %v1782 = vadd.f32 %v1667, %v1781
    %v1783 = vrot.slane %v1782, 2
    %v1784 = vadd.f32 %v1782, %v1783
    %v1785 = vrot.slane %v1784, 1
    %v1786 = vadd.f32 %v1784, %v1785
    %v1787 = vrot.slane %v1669, 4
    %v1788 = vadd.f32 %v1669, %v1787
    %v1789 = vrot.slane %v1788, 2
    %v1790 = vadd.f32 %v1788, %v1789
    %v1791 = vrot.slane %v1790, 1
    %v1792 = vadd.f32 %v1790, %v1791
    %v1793 = vrot.slane %v1749, 4
    %v1794 = vadd.f32 %v1749, %v1793
    %v1795 = vrot.slane %v1794, 2
    %v1796 = vadd.f32 %v1794, %v1795
    %v1797 = vrot.slane %v1796, 1
    %v1798 = vadd.f32 %v1796, %v1797
    %v1799 = vrot.slane %v1751, 4
    %v1800 = vadd.f32 %v1751, %v1799
    %v1801 = vrot.slane %v1800, 2
    %v1802 = vadd.f32 %v1800, %v1801
    %v1803 = vrot.slane %v1802, 1
    %v1804 = vadd.f32 %v1802, %v1803
    %v1805 = vmul.f32 %v1503, %v1503
    %v1806 = vmul.f32 %v1505, %v1505
    %v1807 = vmul.f32 %v1585, %v1585
    %v1808 = vmul.f32 %v1587, %v1587
    %v1809 = vmul.f32 %v1667, %v1667
    %v1810 = vmul.f32 %v1669, %v1669
    %v1811 = vmul.f32 %v1749, %v1749
    %v1812 = vmul.f32 %v1751, %v1751
    %v1813 = vrot.slane %v1805, 4
    %v1814 = vadd.f32 %v1805, %v1813
    %v1815 = vrot.slane %v1814, 2
    %v1816 = vadd.f32 %v1814, %v1815
    %v1817 = vrot.slane %v1816, 1
    %v1818 = vadd.f32 %v1816, %v1817
    %v1819 = vrot.slane %v1806, 4
    %v1820 = vadd.f32 %v1806, %v1819
    %v1821 = vrot.slane %v1820, 2
    %v1822 = vadd.f32 %v1820, %v1821
    %v1823 = vrot.slane %v1822, 1
    %v1824 = vadd.f32 %v1822, %v1823
    %v1825 = vrot.slane %v1807, 4
    %v1826 = vadd.f32 %v1807, %v1825
    %v1827 = vrot.slane %v1826, 2
    %v1828 = vadd.f32 %v1826, %v1827
    %v1829 = vrot.slane %v1828, 1
    %v1830 = vadd.f32 %v1828, %v1829
    %v1831 = vrot.slane %v1808, 4
    %v1832 = vadd.f32 %v1808, %v1831
    %v1833 = vrot.slane %v1832, 2
    %v1834 = vadd.f32 %v1832, %v1833
    %v1835 = vrot.slane %v1834, 1
    %v1836 = vadd.f32 %v1834, %v1835
    %v1837 = vrot.slane %v1809, 4
    %v1838 = vadd.f32 %v1809, %v1837
    %v1839 = vrot.slane %v1838, 2
    %v1840 = vadd.f32 %v1838, %v1839
    %v1841 = vrot.slane %v1840, 1
    %v1842 = vadd.f32 %v1840, %v1841
    %v1843 = vrot.slane %v1810, 4
    %v1844 = vadd.f32 %v1810, %v1843
    %v1845 = vrot.slane %v1844, 2
    %v1846 = vadd.f32 %v1844, %v1845
    %v1847 = vrot.slane %v1846, 1
    %v1848 = vadd.f32 %v1846, %v1847
    %v1849 = vrot.slane %v1811, 4
    %v1850 = vadd.f32 %v1811, %v1849
    %v1851 = vrot.slane %v1850, 2
    %v1852 = vadd.f32 %v1850, %v1851
    %v1853 = vrot.slane %v1852, 1
    %v1854 = vadd.f32 %v1852, %v1853
    %v1855 = vrot.slane %v1812, 4
    %v1856 = vadd.f32 %v1812, %v1855
    %v1857 = vrot.slane %v1856, 2
    %v1858 = vadd.f32 %v1856, %v1857
    %v1859 = vrot.slane %v1858, 1
    %v1860 = vadd.f32 %v1858, %v1859
    %v1861 = vmul.f32 %v1762, 0.125
    %v1862 = vmul.f32 %v1768, 0.125
    %v1863 = vmul.f32 %v1774, 0.125
    %v1864 = vmul.f32 %v1780, 0.125
    %v1865 = vmul.f32 %v1786, 0.125
    %v1866 = vmul.f32 %v1792, 0.125
    %v1867 = vmul.f32 %v1798, 0.125
    %v1868 = vmul.f32 %v1804, 0.125
    %v1869 = vmul.f32 %v1818, 0.125
    %v1870 = vmul.f32 %v1824, 0.125
    %v1871 = vmul.f32 %v1830, 0.125
    %v1872 = vmul.f32 %v1836, 0.125
    %v1873 = vmul.f32 %v1842, 0.125
    %v1874 = vmul.f32 %v1848, 0.125
    %v1875 = vmul.f32 %v1854, 0.125
    %v1876 = vmul.f32 %v1860, 0.125
    %v1877 = vmul.f32 %v1861, %v1861
    %v1878 = vmul.f32 %v1862, %v1862
    %v1879 = vmul.f32 %v1863, %v1863
    %v1880 = vmul.f32 %v1864, %v1864
    %v1881 = vmul.f32 %v1865, %v1865
    %v1882 = vmul.f32 %v1866, %v1866
    %v1883 = vmul.f32 %v1867, %v1867
    %v1884 = vmul.f32 %v1868, %v1868
    %v1885 = vsub.f32 %v1869, %v1877
    %v1886 = vsub.f32 %v1870, %v1878
    %v1887 = vsub.f32 %v1871, %v1879
    %v1888 = vsub.f32 %v1872, %v1880
    %v1889 = vsub.f32 %v1873, %v1881
    %v1890 = vsub.f32 %v1874, %v1882
    %v1891 = vsub.f32 %v1875, %v1883
    %v1892 = vsub.f32 %v1876, %v1884
    %v1893 = vadd.f32 %v1885, 0.8
    %v1894 = vadd.f32 %v1886, 0.8
    %v1895 = vadd.f32 %v1887, 0.8
    %v1896 = vadd.f32 %v1888, 0.8
    %v1897 = vadd.f32 %v1889, 0.8
    %v1898 = vadd.f32 %v1890, 0.8
    %v1899 = vadd.f32 %v1891, 0.8
    %v1900 = vadd.f32 %v1892, 0.8
    %v1901 = vrsqrt.pop %v1893
    %v1902 = vrsqrt.pop %v1894
    %v1903 = vrsqrt.pop %v1895
    %v1904 = vrsqrt.pop %v1896
    %v1905 = vrsqrt.pop %v1897
    %v1906 = vrsqrt.pop %v1898
    %v1907 = vrsqrt.pop %v1899
    %v1908 = vrsqrt.pop %v1900
    %v1917 = vcombine.low %v1901, %v1902
    %v1918 = vcombine.low %v1903, %v1904
    %v1919 = vcombine.low %v1905, %v1906
    %v1920 = vcombine.low %v1907, %v1908
    %v1922 = vunpack.c.l.s4 1966171168
    %v1923 = vunpack.c.0.s8 %v1922
    %v1924 = vlaneseq
    %v1925 = vshrl.u32 %v1924, 7
    %v1926 = vsub.s32 %v1923, %v1925
    %v1927 = vrot.slane %v1917, %v1926
    %v1929 = vunpack.c.l.s4 1966171168
    %v1930 = vunpack.c.0.s8 %v1929
    %v1931 = vlaneseq
    %v1932 = vshrl.u32 %v1931, 7
    %v1933 = vsub.s32 %v1930, %v1932
    %v1934 = vrot.slane %v1918, %v1933
    %v1936 = vunpack.c.l.s4 1966171168
    %v1937 = vunpack.c.0.s8 %v1936
    %v1938 = vlaneseq
    %v1939 = vshrl.u32 %v1938, 7
    %v1940 = vsub.s32 %v1937, %v1939
    %v1941 = vrot.slane %v1919, %v1940
    %v1943 = vunpack.c.l.s4 1966171168
    %v1944 = vunpack.c.0.s8 %v1943
    %v1945 = vlaneseq
    %v1946 = vshrl.u32 %v1945, 7
    %v1947 = vsub.s32 %v1944, %v1946
    %v1948 = vrot.slane %v1920, %v1947
    %v1949 = vcombine.low %v1927, %v1934
    %v1950 = vcombine.low %v1941, %v1948
    %v1952 = vunpack.c.l.s4 1966171168
    %v1953 = vunpack.c.0.s8 %v1952
    %v1954 = vlaneseq
    %v1955 = vshrl.u32 %v1954, 7
    %v1956 = vsub.s32 %v1953, %v1955
    %v1957 = vrot.slane %v1949, %v1956
    %v1959 = vunpack.c.l.s4 1966171168
    %v1960 = vunpack.c.0.s8 %v1959
    %v1961 = vlaneseq
    %v1962 = vshrl.u32 %v1961, 7
    %v1963 = vsub.s32 %v1960, %v1962
    %v1964 = vrot.slane %v1950, %v1963
    %v1965 = vcombine.low %v1957, %v1964
    %v1967 = vmul.f32 %v1755, %v1965
    %v1969 = vlaneseq
    %v1970 = vshrl.u32 %v1969, 7
    %v1971 = vsub.s32 0, %v1970
    %v1972 = vrot.slane %v1967, %v1971
    %v1973 = vlaneseq
    %v1974 = vshrl.u32 %v1973, 7
    %v1975 = vsub.s32 1, %v1974
    %v1976 = vrot.slane %v1967, %v1975
    %v1977 = vlaneseq
    %v1978 = vshrl.u32 %v1977, 7
    %v1979 = vsub.s32 2, %v1978
    %v1980 = vrot.slane %v1967, %v1979
    %v1981 = vlaneseq
    %v1982 = vshrl.u32 %v1981, 7
    %v1983 = vsub.s32 3, %v1982
    %v1984 = vrot.slane %v1967, %v1983
    %v1985 = vlaneseq
    %v1986 = vshrl.u32 %v1985, 7
    %v1987 = vsub.s32 4, %v1986
    %v1988 = vrot.slane %v1967, %v1987
    %v1989 = vlaneseq
    %v1990 = vshrl.u32 %v1989, 7
    %v1991 = vsub.s32 5, %v1990
    %v1992 = vrot.slane %v1967, %v1991
    %v1993 = vlaneseq
    %v1994 = vshrl.u32 %v1993, 7
    %v1995 = vsub.s32 6, %v1994
    %v1996 = vrot.slane %v1967, %v1995
    %v1997 = vlaneseq
    %v1998 = vshrl.u32 %v1997, 7
    %v1999 = vsub.s32 7, %v1998
    %v2000 = vrot.slane %v1967, %v1999
    %v2009 = vmul.f32 %v1861, %v1972
    %v2010 = vmul.f32 %v1862, %v1976
    %v2011 = vmul.f32 %v1863, %v1980
    %v2012 = vmul.f32 %v1864, %v1984
    %v2013 = vmul.f32 %v1865, %v1988
    %v2014 = vmul.f32 %v1866, %v1992
    %v2015 = vmul.f32 %v1867, %v1996
    %v2016 = vmul.f32 %v1868, %v2000
    %v2025 = vcombine.low %v2009, %v2010
    %v2026 = vcombine.low %v2011, %v2012
    %v2027 = vcombine.low %v2013, %v2014
    %v2028 = vcombine.low %v2015, %v2016
    %v2030 = vunpack.c.l.s4 1966171168
    %v2031 = vunpack.c.0.s8 %v2030
    %v2032 = vlaneseq
    %v2033 = vshrl.u32 %v2032, 7
    %v2034 = vsub.s32 %v2031, %v2033
    %v2035 = vrot.slane %v2025, %v2034
    %v2037 = vunpack.c.l.s4 1966171168
    %v2038 = vunpack.c.0.s8 %v2037
    %v2039 = vlaneseq
    %v2040 = vshrl.u32 %v2039, 7
    %v2041 = vsub.s32 %v2038, %v2040
    %v2042 = vrot.slane %v2026, %v2041
    %v2044 = vunpack.c.l.s4 1966171168
    %v2045 = vunpack.c.0.s8 %v2044
    %v2046 = vlaneseq
    %v2047 = vshrl.u32 %v2046, 7
    %v2048 = vsub.s32 %v2045, %v2047
    %v2049 = vrot.slane %v2027, %v2048
    %v2051 = vunpack.c.l.s4 1966171168
    %v2052 = vunpack.c.0.s8 %v2051
    %v2053 = vlaneseq
    %v2054 = vshrl.u32 %v2053, 7
    %v2055 = vsub.s32 %v2052, %v2054
    %v2056 = vrot.slane %v2028, %v2055
    %v2057 = vcombine.low %v2035, %v2042
    %v2058 = vcombine.low %v2049, %v2056
    %v2060 = vunpack.c.l.s4 1966171168
    %v2061 = vunpack.c.0.s8 %v2060
    %v2062 = vlaneseq
    %v2063 = vshrl.u32 %v2062, 7
    %v2064 = vsub.s32 %v2061, %v2063
    %v2065 = vrot.slane %v2057, %v2064
    %v2067 = vunpack.c.l.s4 1966171168
    %v2068 = vunpack.c.0.s8 %v2067
    %v2069 = vlaneseq
    %v2070 = vshrl.u32 %v2069, 7
    %v2071 = vsub.s32 %v2068, %v2070
    %v2072 = vrot.slane %v2058, %v2071
    %v2073 = vcombine.low %v2065, %v2072
    %v2075 = vsub.f32 %v1756, %v2073
    %v2076 = vmul.f32 %v1503, %v1972
    %v2077 = vmul.f32 %v1505, %v1976
    %v2078 = vmul.f32 %v1585, %v1980
    %v2079 = vmul.f32 %v1587, %v1984
    %v2080 = vmul.f32 %v1667, %v1988
    %v2081 = vmul.f32 %v1669, %v1992
    %v2082 = vmul.f32 %v1749, %v1996
    %v2083 = vmul.f32 %v1751, %v2000
    %v2085 = vlaneseq
    %v2086 = vshrl.u32 %v2085, 7
    %v2087 = vsub.s32 0, %v2086
    %v2088 = vrot.slane %v2075, %v2087
    %v2089 = vlaneseq
    %v2090 = vshrl.u32 %v2089, 7
    %v2091 = vsub.s32 1, %v2090
    %v2092 = vrot.slane %v2075, %v2091
    %v2093 = vlaneseq
    %v2094 = vshrl.u32 %v2093, 7
    %v2095 = vsub.s32 2, %v2094
    %v2096 = vrot.slane %v2075, %v2095
    %v2097 = vlaneseq
    %v2098 = vshrl.u32 %v2097, 7
    %v2099 = vsub.s32 3, %v2098
    %v2100 = vrot.slane %v2075, %v2099
    %v2101 = vlaneseq
    %v2102 = vshrl.u32 %v2101, 7
    %v2103 = vsub.s32 4, %v2102
    %v2104 = vrot.slane %v2075, %v2103
    %v2105 = vlaneseq
    %v2106 = vshrl.u32 %v2105, 7
    %v2107 = vsub.s32 5, %v2106
    %v2108 = vrot.slane %v2075, %v2107
    %v2109 = vlaneseq
    %v2110 = vshrl.u32 %v2109, 7
    %v2111 = vsub.s32 6, %v2110
    %v2112 = vrot.slane %v2075, %v2111
    %v2113 = vlaneseq
    %v2114 = vshrl.u32 %v2113, 7
    %v2115 = vsub.s32 7, %v2114
    %v2116 = vrot.slane %v2075, %v2115
    %v2125 = vadd.f32 %v2076, %v2088
    %v2126 = vadd.f32 %v2077, %v2092
    %v2127 = vadd.f32 %v2078, %v2096
    %v2128 = vadd.f32 %v2079, %v2100
    %v2129 = vadd.f32 %v2080, %v2104
    %v2130 = vadd.f32 %v2081, %v2108
    %v2131 = vadd.f32 %v2082, %v2112
    %v2132 = vadd.f32 %v2083, %v2116
    %vm2133 = vcmp.gt.f32.partialorder %v2125, 0.0
    %vm2134 = vcmp.gt.f32.partialorder %v2126, 0.0
    %vm2135 = vcmp.gt.f32.partialorder %v2127, 0.0
    %vm2136 = vcmp.gt.f32.partialorder %v2128, 0.0
    %vm2137 = vcmp.gt.f32.partialorder %v2129, 0.0
    %vm2138 = vcmp.gt.f32.partialorder %v2130, 0.0
    %vm2139 = vcmp.gt.f32.partialorder %v2131, 0.0
    %vm2140 = vcmp.gt.f32.partialorder %v2132, 0.0
    %v2141 = vmul.f32 %v2125, 0.2
    %v2142 = vmul.f32 %v2126, 0.2
    %v2143 = vmul.f32 %v2127, 0.2
    %v2144 = vmul.f32 %v2128, 0.2
    %v2145 = vmul.f32 %v2129, 0.2
    %v2146 = vmul.f32 %v2130, 0.2
    %v2147 = vmul.f32 %v2131, 0.2
    %v2148 = vmul.f32 %v2132, 0.2
    %v2149 = vsel %vm2133, %v2125, %v2141
    %v2150 = vsel %vm2134, %v2126, %v2142
    %v2151 = vsel %vm2135, %v2127, %v2143
    %v2152 = vsel %vm2136, %v2128, %v2144
    %v2153 = vsel %vm2137, %v2129, %v2145
    %v2154 = vsel %vm2138, %v2130, %v2146
    %v2155 = vsel %vm2139, %v2131, %v2147
    %v2156 = vsel %vm2140, %v2132, %v2148
    %s2157 = smul.u32 4, 128
    %s2158 = smul.u32 %s2157, 1
    %s2159 = sshll.u32 %s2158, 4
    %2160 = dma.done %s114, %s2159
    %v2161 = vpack.c.bf16 %v2149, %v2149
    %v2162 = vpack.c.bf16 %v2150, %v2150
    %v2163 = vpack.c.bf16 %v2151, %v2151
    %v2164 = vpack.c.bf16 %v2152, %v2152
    %v2165 = vpack.c.bf16 %v2153, %v2153
    %v2166 = vpack.c.bf16 %v2154, %v2154
    %v2167 = vpack.c.bf16 %v2155, %v2155
    %v2168 = vpack.c.bf16 %v2156, %v2156
    %v2169 = vld [vmem:[#allocation3] sm:$0xff]
    %v2170 = vld [vmem:[#allocation3 + $0x8] sm:$0xff]
    %v2171 = vld [vmem:[#allocation3 + $0x10] sm:$0xff]
    %v2172 = vld [vmem:[#allocation3 + $0x18] sm:$0xff]
    %v2173 = vld [vmem:[#allocation3 + $0x20] sm:$0xff]
    %v2174 = vld [vmem:[#allocation3 + $0x28] sm:$0xff]
    %v2175 = vld [vmem:[#allocation3 + $0x30] sm:$0xff]
    %v2176 = vld [vmem:[#allocation3 + $0x38] sm:$0xff]
    %v2177 = vld [vmem:[#allocation3 + $0x40] sm:$0xff]
    %v2178 = vld [vmem:[#allocation3 + $0x48] sm:$0xff]
    %v2179 = vld [vmem:[#allocation3 + $0x50] sm:$0xff]
    %v2180 = vld [vmem:[#allocation3 + $0x58] sm:$0xff]
    %v2181 = vld [vmem:[#allocation3 + $0x60] sm:$0xff]
    %v2182 = vld [vmem:[#allocation3 + $0x68] sm:$0xff]
    %v2183 = vld [vmem:[#allocation3 + $0x70] sm:$0xff]
    %v2184 = vld [vmem:[#allocation3 + $0x78] sm:$0xff]
    %v2185 = vld [vmem:[#allocation3 + $0x80] sm:$0xff]
    %v2186 = vld [vmem:[#allocation3 + $0x88] sm:$0xff]
    %v2187 = vld [vmem:[#allocation3 + $0x90] sm:$0xff]
    %v2188 = vld [vmem:[#allocation3 + $0x98] sm:$0xff]
    %v2189 = vld [vmem:[#allocation3 + $0xa0] sm:$0xff]
    %v2190 = vld [vmem:[#allocation3 + $0xa8] sm:$0xff]
    %v2191 = vld [vmem:[#allocation3 + $0xb0] sm:$0xff]
    %v2192 = vld [vmem:[#allocation3 + $0xb8] sm:$0xff]
    %v2193 = vld [vmem:[#allocation3 + $0xc0] sm:$0xff]
    %v2194 = vld [vmem:[#allocation3 + $0xc8] sm:$0xff]
    %v2195 = vld [vmem:[#allocation3 + $0xd0] sm:$0xff]
    %v2196 = vld [vmem:[#allocation3 + $0xd8] sm:$0xff]
    %v2197 = vld [vmem:[#allocation3 + $0xe0] sm:$0xff]
    %v2198 = vld [vmem:[#allocation3 + $0xe8] sm:$0xff]
    %v2199 = vld [vmem:[#allocation3 + $0xf0] sm:$0xff]
    %v2200 = vld [vmem:[#allocation3 + $0xf8] sm:$0xff]
    %v2201 = vld [vmem:[#allocation3 + $0x100] sm:$0xff]
    %v2202 = vld [vmem:[#allocation3 + $0x108] sm:$0xff]
    %v2203 = vld [vmem:[#allocation3 + $0x110] sm:$0xff]
    %v2204 = vld [vmem:[#allocation3 + $0x118] sm:$0xff]
    %v2205 = vld [vmem:[#allocation3 + $0x120] sm:$0xff]
    %v2206 = vld [vmem:[#allocation3 + $0x128] sm:$0xff]
    %v2207 = vld [vmem:[#allocation3 + $0x130] sm:$0xff]
    %v2208 = vld [vmem:[#allocation3 + $0x138] sm:$0xff]
    %v2209 = vld [vmem:[#allocation3 + $0x140] sm:$0xff]
    %v2210 = vld [vmem:[#allocation3 + $0x148] sm:$0xff]
    %v2211 = vld [vmem:[#allocation3 + $0x150] sm:$0xff]
    %v2212 = vld [vmem:[#allocation3 + $0x158] sm:$0xff]
    %v2213 = vld [vmem:[#allocation3 + $0x160] sm:$0xff]
    %v2214 = vld [vmem:[#allocation3 + $0x168] sm:$0xff]
    %v2215 = vld [vmem:[#allocation3 + $0x170] sm:$0xff]
    %v2216 = vld [vmem:[#allocation3 + $0x178] sm:$0xff]
    %v2217 = vld [vmem:[#allocation3 + $0x180] sm:$0xff]
    %v2218 = vld [vmem:[#allocation3 + $0x188] sm:$0xff]
    %v2219 = vld [vmem:[#allocation3 + $0x190] sm:$0xff]
    %v2220 = vld [vmem:[#allocation3 + $0x198] sm:$0xff]
    %v2221 = vld [vmem:[#allocation3 + $0x1a0] sm:$0xff]
    %v2222 = vld [vmem:[#allocation3 + $0x1a8] sm:$0xff]
    %v2223 = vld [vmem:[#allocation3 + $0x1b0] sm:$0xff]
    %v2224 = vld [vmem:[#allocation3 + $0x1b8] sm:$0xff]
    %v2225 = vld [vmem:[#allocation3 + $0x1c0] sm:$0xff]
    %v2226 = vld [vmem:[#allocation3 + $0x1c8] sm:$0xff]
    %v2227 = vld [vmem:[#allocation3 + $0x1d0] sm:$0xff]
    %v2228 = vld [vmem:[#allocation3 + $0x1d8] sm:$0xff]
    %v2229 = vld [vmem:[#allocation3 + $0x1e0] sm:$0xff]
    %v2230 = vld [vmem:[#allocation3 + $0x1e8] sm:$0xff]
    %v2231 = vld [vmem:[#allocation3 + $0x1f0] sm:$0xff]
    %v2232 = vld [vmem:[#allocation3 + $0x1f8] sm:$0xff]
    %v2233 = vld [vmem:[%s5] sm:$0x1]
    %v2235 = vlaneseq
    %v2236 = vshrl.u32 %v2235, 7
    %v2237 = vsub.s32 0, %v2236
    %v2238 = vrot.slane %v2233, %v2237
    %2240 = vmatprep.subr.bf16.mxu0 0
    %2241 = vmatpush1.bf16.msra.mxu0 %v2169
    %2242 = vmatprep.subr.bf16.mxu0 0
    %2243 = vmatpush1.bf16.msra.mxu0 %v2170
    %2244 = vmatprep.subr.bf16.mxu0 0
    %2245 = vmatpush1.bf16.msra.mxu0 %v2171
    %2246 = vmatprep.subr.bf16.mxu0 0
    %2247 = vmatpush1.bf16.msra.mxu0 %v2172
    %2248 = vmatprep.subr.bf16.mxu0 0
    %2249 = vmatpush1.bf16.msra.mxu0 %v2173
    %2250 = vmatprep.subr.bf16.mxu0 0
    %2251 = vmatpush1.bf16.msra.mxu0 %v2174
    %2252 = vmatprep.subr.bf16.mxu0 0
    %2253 = vmatpush1.bf16.msra.mxu0 %v2175
    %2254 = vmatprep.subr.bf16.mxu0 0
    %2255 = vmatpush1.bf16.msra.mxu0 %v2176
    %2256 = vmatprep.subr.bf16.mxu0 0
    %2257 = vmatpush1.bf16.msra.mxu0 %v2177
    %2258 = vmatprep.subr.bf16.mxu0 0
    %2259 = vmatpush1.bf16.msra.mxu0 %v2178
    %2260 = vmatprep.subr.bf16.mxu0 0
    %2261 = vmatpush1.bf16.msra.mxu0 %v2179
    %2262 = vmatprep.subr.bf16.mxu0 0
    %2263 = vmatpush1.bf16.msra.mxu0 %v2180
    %2264 = vmatprep.subr.bf16.mxu0 0
    %2265 = vmatpush1.bf16.msra.mxu0 %v2181
    %2266 = vmatprep.subr.bf16.mxu0 0
    %2267 = vmatpush1.bf16.msra.mxu0 %v2182
    %2268 = vmatprep.subr.bf16.mxu0 0
    %2269 = vmatpush1.bf16.msra.mxu0 %v2183
    %2270 = vmatprep.subr.bf16.mxu0 0
    %2271 = vmatpush1.bf16.msra.mxu0 %v2184
    %2272 = vmatprep.mubr.bf16.mxu0 %v2162
    %2273 = vmatmul.mubr.bf16.gmra.mrb[0].mxu0 %v2161
    %v2274 = vpop.f32.mrb[0].mxu0
    %v2275 = vadd.f32 %v2238, %v2274
    %v2276 = vpop.f32.mrb[0].mxu0
    %v2277 = vpop.f32.mrb[0].mxu0
    %v2278 = vpop.f32.mrb[0].mxu0
    %2279 = vdwg.mxu0
    %2280 = vmatprep.subr.bf16.mxu0 0
    %2281 = vmatpush1.bf16.msra.mxu0 %v2185
    %2282 = vmatprep.subr.bf16.mxu0 0
    %2283 = vmatpush1.bf16.msra.mxu0 %v2186
    %2284 = vmatprep.subr.bf16.mxu0 0
    %2285 = vmatpush1.bf16.msra.mxu0 %v2187
    %2286 = vmatprep.subr.bf16.mxu0 0
    %2287 = vmatpush1.bf16.msra.mxu0 %v2188
    %2288 = vmatprep.subr.bf16.mxu0 0
    %2289 = vmatpush1.bf16.msra.mxu0 %v2189
    %2290 = vmatprep.subr.bf16.mxu0 0
    %2291 = vmatpush1.bf16.msra.mxu0 %v2190
    %2292 = vmatprep.subr.bf16.mxu0 0
    %2293 = vmatpush1.bf16.msra.mxu0 %v2191
    %2294 = vmatprep.subr.bf16.mxu0 0
    %2295 = vmatpush1.bf16.msra.mxu0 %v2192
    %2296 = vmatprep.subr.bf16.mxu0 0
    %2297 = vmatpush1.bf16.msra.mxu0 %v2193
    %2298 = vmatprep.subr.bf16.mxu0 0
    %2299 = vmatpush1.bf16.msra.mxu0 %v2194
    %2300 = vmatprep.subr.bf16.mxu0 0
    %2301 = vmatpush1.bf16.msra.mxu0 %v2195
    %2302 = vmatprep.subr.bf16.mxu0 0
    %2303 = vmatpush1.bf16.msra.mxu0 %v2196
    %2304 = vmatprep.subr.bf16.mxu0 0
    %2305 = vmatpush1.bf16.msra.mxu0 %v2197
    %2306 = vmatprep.subr.bf16.mxu0 0
    %2307 = vmatpush1.bf16.msra.mxu0 %v2198
    %2308 = vmatprep.subr.bf16.mxu0 0
    %2309 = vmatpush1.bf16.msra.mxu0 %v2199
    %2310 = vmatprep.subr.bf16.mxu0 0
    %2311 = vmatpush1.bf16.msra.mxu0 %v2200
    %2312 = vmatprep.mubr.bf16.mxu0 %v2164
    %2313 = vmatmul.mubr.bf16.gmra.mrb[0].mxu0 %v2163
    %v2314 = vpop.f32.mrb[0].mxu0
    %v2315 = vadd.f32 %v2275, %v2314
    %v2316 = vpop.f32.mrb[0].mxu0
    %v2317 = vpop.f32.mrb[0].mxu0
    %v2318 = vpop.f32.mrb[0].mxu0
    %2319 = vdwg.mxu0
    %2320 = vmatprep.subr.bf16.mxu0 0
    %2321 = vmatpush1.bf16.msra.mxu0 %v2201
    %2322 = vmatprep.subr.bf16.mxu0 0
    %2323 = vmatpush1.bf16.msra.mxu0 %v2202
    %2324 = vmatprep.subr.bf16.mxu0 0
    %2325 = vmatpush1.bf16.msra.mxu0 %v2203
    %2326 = vmatprep.subr.bf16.mxu0 0
    %2327 = vmatpush1.bf16.msra.mxu0 %v2204
    %2328 = vmatprep.subr.bf16.mxu0 0
    %2329 = vmatpush1.bf16.msra.mxu0 %v2205
    %2330 = vmatprep.subr.bf16.mxu0 0
    %2331 = vmatpush1.bf16.msra.mxu0 %v2206
    %2332 = vmatprep.subr.bf16.mxu0 0
    %2333 = vmatpush1.bf16.msra.mxu0 %v2207
    %2334 = vmatprep.subr.bf16.mxu0 0
    %2335 = vmatpush1.bf16.msra.mxu0 %v2208
    %2336 = vmatprep.subr.bf16.mxu0 0
    %2337 = vmatpush1.bf16.msra.mxu0 %v2209
    %2338 = vmatprep.subr.bf16.mxu0 0
    %2339 = vmatpush1.bf16.msra.mxu0 %v2210
    %2340 = vmatprep.subr.bf16.mxu0 0
    %2341 = vmatpush1.bf16.msra.mxu0 %v2211
    %2342 = vmatprep.subr.bf16.mxu0 0
    %2343 = vmatpush1.bf16.msra.mxu0 %v2212
    %2344 = vmatprep.subr.bf16.mxu0 0
    %2345 = vmatpush1.bf16.msra.mxu0 %v2213
    %2346 = vmatprep.subr.bf16.mxu0 0
    %2347 = vmatpush1.bf16.msra.mxu0 %v2214
    %2348 = vmatprep.subr.bf16.mxu0 0
    %2349 = vmatpush1.bf16.msra.mxu0 %v2215
    %2350 = vmatprep.subr.bf16.mxu0 0
    %2351 = vmatpush1.bf16.msra.mxu0 %v2216
    %2352 = vmatprep.mubr.bf16.mxu0 %v2166
    %2353 = vmatmul.mubr.bf16.gmra.mrb[0].mxu0 %v2165
    %v2354 = vpop.f32.mrb[0].mxu0
    %v2355 = vadd.f32 %v2315, %v2354
    %v2356 = vpop.f32.mrb[0].mxu0
    %v2357 = vpop.f32.mrb[0].mxu0
    %v2358 = vpop.f32.mrb[0].mxu0
    %2359 = vdwg.mxu0
    %2360 = vmatprep.subr.bf16.mxu0 0
    %2361 = vmatpush1.bf16.msra.mxu0 %v2217
    %2362 = vmatprep.subr.bf16.mxu0 0
    %2363 = vmatpush1.bf16.msra.mxu0 %v2218
    %2364 = vmatprep.subr.bf16.mxu0 0
    %2365 = vmatpush1.bf16.msra.mxu0 %v2219
    %2366 = vmatprep.subr.bf16.mxu0 0
    %2367 = vmatpush1.bf16.msra.mxu0 %v2220
    %2368 = vmatprep.subr.bf16.mxu0 0
    %2369 = vmatpush1.bf16.msra.mxu0 %v2221
    %2370 = vmatprep.subr.bf16.mxu0 0
    %2371 = vmatpush1.bf16.msra.mxu0 %v2222
    %2372 = vmatprep.subr.bf16.mxu0 0
    %2373 = vmatpush1.bf16.msra.mxu0 %v2223
    %2374 = vmatprep.subr.bf16.mxu0 0
    %2375 = vmatpush1.bf16.msra.mxu0 %v2224
    %2376 = vmatprep.subr.bf16.mxu0 0
    %2377 = vmatpush1.bf16.msra.mxu0 %v2225
    %2378 = vmatprep.subr.bf16.mxu0 0
    %2379 = vmatpush1.bf16.msra.mxu0 %v2226
    %2380 = vmatprep.subr.bf16.mxu0 0
    %2381 = vmatpush1.bf16.msra.mxu0 %v2227
    %2382 = vmatprep.subr.bf16.mxu0 0
    %2383 = vmatpush1.bf16.msra.mxu0 %v2228
    %2384 = vmatprep.subr.bf16.mxu0 0
    %2385 = vmatpush1.bf16.msra.mxu0 %v2229
    %2386 = vmatprep.subr.bf16.mxu0 0
    %2387 = vmatpush1.bf16.msra.mxu0 %v2230
    %2388 = vmatprep.subr.bf16.mxu0 0
    %2389 = vmatpush1.bf16.msra.mxu0 %v2231
    %2390 = vmatprep.subr.bf16.mxu0 0
    %2391 = vmatpush1.bf16.msra.mxu0 %v2232
    %2392 = vmatprep.mubr.bf16.mxu0 %v2168
    %2393 = vmatmul.mubr.bf16.gmra.mrb[0].mxu0 %v2167
    %v2394 = vpop.f32.mrb[0].mxu0
    %v2395 = vadd.f32 %v2355, %v2394
    %v2396 = vpop.f32.mrb[0].mxu0
    %v2397 = vpop.f32.mrb[0].mxu0
    %v2398 = vpop.f32.mrb[0].mxu0
    %2399 = vdwg.mxu0
    %v2400 = vtanh.pop %v2395
    %2401 = vst [vmem:[%s8] sm:$0xff] %v2400
    // Predicated region
    $region46: #{generator_forward.1} parent=1 // pred_check
      _
    $region47: #{generator_forward.1} parent=1 // pred_check_branch
      %2403 = sbr.rel (0) target = $region49
    $region48: #{generator_forward.1} parent=1 // pred_region
      _
    $region49: #{generator_forward.1} parent=1 // pred_fallthru
      _
    // Predicated region
    $region50: #{generator_forward.1} parent=1 // pred_check
      _
    $region51: #{generator_forward.1} parent=1 // pred_check_branch
      %2405 = sbr.rel (0) target = $region53
    $region52: #{generator_forward.1} parent=1 // pred_region
      _
    $region53: #{generator_forward.1} parent=1 // pred_fallthru
      _
    %2406 = vsyncpa [#allocation6], 1
    %2407 = vsyncpa [#allocation8], 1
    %2408 = vsyncpa [#allocation11], 1
  %2409 = vsyncmov [#allocation4]
  %s2410 = vpop.sfrf %2409
  %p2411 = scmp.eq.s32.totalorder %s2410, 0
  %p2412 = pneg %p2411
  %2414 = shalt.err (%p2412)
  %s2415 = scalar_lea.sflag [#allocation4], 1
  %2416 = vsyncmov %s2415
  %s2417 = vpop.sfrf %2416
  %p2418 = scmp.eq.s32.totalorder %s2417, 0
  %p2419 = pneg %p2418
  %2421 = shalt.err (%p2419)

</llo_original>
